<compile_context>
chip_gen: v7x
topology: tpu7x:2x2x1
jax: 0.10.0
libtpu: 0.0.40
codegen_flags: <defaults>
</compile_context>

<pallas_src>
import math
import functools

import jax
import jax.numpy as jnp
from jax.experimental import pallas as pl
from jax.experimental.pallas import tpu as pltpu


def _choose_query_tile(T: int) -> int:
    # Largest "nice" tile that divides T (multiples of 8 for sublane alignment);
    # falls back to the full sequence for odd sizes.
    for t in (256, 128, 64, 32, 16, 8):
        if t <= T and T % t == 0:
            return t
    return T


def _mha_kernel(xq_ref, xkv_ref,
                wq_ref, wk_ref, wv_ref, wp_ref,
                bq_ref, bk_ref, bv_ref, bp_ref,
                o_ref,
                *, num_heads: int, head_size: int):
    f32 = jnp.float32
    bf16 = jnp.bfloat16

    xq = xq_ref[0].astype(bf16)      # (Tq, C) query tile
    xkv = xkv_ref[0].astype(bf16)    # (T,  C) full sequence for K/V
    tq = xq.shape[0]
    tkv = xkv.shape[0]

    # Lane-dense projections on the MXU (bf16 operands, f32 accumulation).
    # The 1/sqrt(head_size) scale is already folded into wq/bq host-side.
    q = jnp.dot(xq, wq_ref[...], preferred_element_type=f32) + bq_ref[...]    # (Tq, C) f32
    k = jnp.dot(xkv, wk_ref[...], preferred_element_type=f32) + bk_ref[...]   # (T,  C) f32
    v = jnp.dot(xkv, wv_ref[...], preferred_element_type=f32) + bv_ref[...]   # (T,  C) f32

    def to_heads(t, n):
        # (n, C) -> (H, n, hd): heads on a leading (non-lane) axis.
        return jnp.transpose(t.reshape(n, num_heads, head_size), (1, 0, 2))

    qh = to_heads(q, tq).astype(bf16)     # (H, Tq, hd)
    kh = to_heads(k, tkv).astype(bf16)    # (H, T,  hd)
    vh = to_heads(v, tkv).astype(bf16)    # (H, T,  hd)

    # Batched per-head scores; K consumed in natural layout (no explicit transpose).
    s = jnp.einsum('hqd,hkd->hqk', qh, kh, preferred_element_type=f32)        # (H, Tq, T) f32

    # TODO(synk): optional attention mask (mask != None branch) not wired in; this matches
    # the mask=None path of the PyTorch forward exactly.

    # Softmax in f32; normalization deferred to the (much smaller) PV output.
    m = jnp.max(s, axis=-1, keepdims=True)
    p = jnp.exp(s - m)
    l = jnp.sum(p, axis=-1, keepdims=True)                                    # (H, Tq, 1)
    acc = jnp.einsum('hqk,hkd->hqd', p.astype(bf16), vh,
                     preferred_element_type=f32)                              # (H, Tq, hd)
    out_h = acc * pl.reciprocal(l, approx=True)                               # (H, Tq, hd) f32

    # Output projection with per-head weight slabs; summing over the leading head axis
    # replaces the lane-dim concatenate of head outputs.
    proj = jnp.einsum('hqd,hdc->hqc', out_h.astype(bf16), wp_ref[...],
                      preferred_element_type=f32)                             # (H, Tq, C)
    out = jnp.sum(proj, axis=0) + bp_ref[...]                                 # (Tq, C)

    o_ref[0] = out.astype(o_ref.dtype)


def multi_head_attention(x, w_qkv, b_qkv, w_proj, b_proj, *, num_heads: int):
    B, T, C = x.shape
    head_size = C // num_heads
    scale = 1.0 / math.sqrt(head_size)

    # Host-side weight prep: split QKV, fold the attention scale into the Q projection,
    # reshape the output projection per head, cast matmul weights to bf16 (MXU-native).
    # Biases stay f32 (VPU adds).
    wq = (w_qkv[:, 0 * C:1 * C] * scale).astype(jnp.bfloat16)
    wk = w_qkv[:, 1 * C:2 * C].astype(jnp.bfloat16)
    wv = w_qkv[:, 2 * C:3 * C].astype(jnp.bfloat16)
    wp = w_proj.reshape(num_heads, head_size, C).astype(jnp.bfloat16)

    bq = (b_qkv[:, 0 * C:1 * C] * scale).astype(jnp.float32)
    bk = b_qkv[:, 1 * C:2 * C].astype(jnp.float32)
    bv = b_qkv[:, 2 * C:3 * C].astype(jnp.float32)
    bp = b_proj.astype(jnp.float32)

    tq = _choose_query_tile(T)
    n_qt = T // tq

    kernel = functools.partial(_mha_kernel, num_heads=num_heads, head_size=head_size)

    return pl.pallas_call(
        kernel,
        out_shape=jax.ShapeDtypeStruct((B, T, C), x.dtype),
        grid_spec=pltpu.PrefetchScalarGridSpec(
            num_scalar_prefetch=0,
            grid=(B, n_qt),
            in_specs=[
                pl.BlockSpec((1, tq, C), lambda b, t: (b, t, 0)),                    # x (query tile)
                pl.BlockSpec((1, T, C), lambda b, t: (b, 0, 0)),                     # x (full seq, K/V)
                pl.BlockSpec((C, C), lambda b, t: (0, 0)),                           # wq (scaled, bf16)
                pl.BlockSpec((C, C), lambda b, t: (0, 0)),                           # wk (bf16)
                pl.BlockSpec((C, C), lambda b, t: (0, 0)),                           # wv (bf16)
                pl.BlockSpec((num_heads, head_size, C), lambda b, t: (0, 0, 0)),     # w_proj per-head
                pl.BlockSpec((1, C), lambda b, t: (0, 0)),                           # bq (scaled)
                pl.BlockSpec((1, C), lambda b, t: (0, 0)),                           # bk
                pl.BlockSpec((1, C), lambda b, t: (0, 0)),                           # bv
                pl.BlockSpec((1, C), lambda b, t: (0, 0)),                           # b_proj
            ],
            out_specs=pl.BlockSpec((1, tq, C), lambda b, t: (b, t, 0)),
        ),
        compiler_params=pltpu.CompilerParams(
            dimension_semantics=("parallel", "parallel")),
    )(x, x, wq, wk, wv, wp, bq, bk, bv, bp)


def _reference(x, w_qkv, b_qkv, w_proj, b_proj, num_heads):
    # Pure-f32 JAX reference mirroring the PyTorch forward (mask=None).
    B, T, C = x.shape
    hd = C // num_heads
    qkv = x @ w_qkv + b_qkv[0]                       # (B, T, 3C)
    q, k, v = jnp.split(qkv, 3, axis=-1)

    def heads(t):  # (B, T, C) -> (B, H, T, hd)
        return t.reshape(B, T, num_heads, hd).transpose(0, 2, 1, 3)

    q, k, v = heads(q), heads(k), heads(v)
    scores = (q @ jnp.swapaxes(k, -2, -1)) / math.sqrt(hd)
    attn = jax.nn.softmax(scores, axis=-1)
    out = (attn @ v).transpose(0, 2, 1, 3).reshape(B, T, C)
    return out @ w_proj + b_proj[0]


if __name__ == "__main__":
    # Small shapes consistent with the module.
    B, T, hidden, num_heads = 2, 8, 32, 4

    key = jax.random.PRNGKey(0)
    k_x, k_wq, k_bq, k_wp, k_bp = jax.random.split(key, 5)

    # nn.Linear-style uniform(-1/sqrt(fan_in), 1/sqrt(fan_in)) init.
    bound = 1.0 / math.sqrt(hidden)
    # Weights stored as (in_features, out_features) so the kernel does x @ W + b.
    w_qkv = jax.random.uniform(k_wq, (hidden, 3 * hidden), jnp.float32, -bound, bound)
    b_qkv = jax.random.uniform(k_bq, (1, 3 * hidden), jnp.float32, -bound, bound)
    w_proj = jax.random.uniform(k_wp, (hidden, hidden), jnp.float32, -bound, bound)
    b_proj = jax.random.uniform(k_bp, (1, hidden), jnp.float32, -bound, bound)

    x = jax.random.normal(k_x, (B, T, hidden), jnp.float32)

    out = multi_head_attention(x, w_qkv, b_qkv, w_proj, b_proj, num_heads=num_heads)
    out = jax.block_until_ready(out)

    ref = _reference(x, w_qkv, b_qkv, w_proj, b_proj, num_heads)
    assert out.shape == (B, T, hidden)
    # bf16 MXU operands (f32 accumulation) vs the pure-f32 reference -> relaxed tolerance.
    assert jnp.allclose(out, ref, atol=3e-2, rtol=3e-2), "mismatch vs JAX reference"

    print("KERNEL_OK")
</pallas_src>

<mosaic_0001>
module attributes {stable_mosaic.version = 11 : i64} {
  func.func @_mha_kernel(%arg0: i32, %arg1: i32, %arg2: memref<1x8x32xf32, #tpu.memory_space<vmem>>, %arg3: memref<1x8x32xf32, #tpu.memory_space<vmem>>, %arg4: memref<32x32xbf16, #tpu.memory_space<vmem>>, %arg5: memref<32x32xbf16, #tpu.memory_space<vmem>>, %arg6: memref<32x32xbf16, #tpu.memory_space<vmem>>, %arg7: memref<4x8x32xbf16, #tpu.memory_space<vmem>>, %arg8: memref<1x32xf32, #tpu.memory_space<vmem>>, %arg9: memref<1x32xf32, #tpu.memory_space<vmem>>, %arg10: memref<1x32xf32, #tpu.memory_space<vmem>>, %arg11: memref<1x32xf32, #tpu.memory_space<vmem>>, %arg12: memref<1x8x32xf32, #tpu.memory_space<vmem>>) attributes {dimension_semantics = [#tpu.dimension_semantics<parallel>, #tpu.dimension_semantics<parallel>], iteration_bounds = array<i64: 2, 1>, scalar_prefetch = 0 : i64, scratch_operands = 0 : i64, tpu.core_type = #tpu.core_type<tc>, window_params = [{transform_indices = @transform_0, window_bounds = array<i64: 1, 8, 32>}, {transform_indices = @transform_1, window_bounds = array<i64: 1, 8, 32>}, {pipeline_mode = #tpu.pipeline_mode<synchronous>, transform_indices = @transform_2, window_bounds = array<i64: 32, 32>}, {pipeline_mode = #tpu.pipeline_mode<synchronous>, transform_indices = @transform_3, window_bounds = array<i64: 32, 32>}, {pipeline_mode = #tpu.pipeline_mode<synchronous>, transform_indices = @transform_4, window_bounds = array<i64: 32, 32>}, {pipeline_mode = #tpu.pipeline_mode<synchronous>, transform_indices = @transform_5, window_bounds = array<i64: 4, 8, 32>}, {pipeline_mode = #tpu.pipeline_mode<synchronous>, transform_indices = @transform_6, window_bounds = array<i64: 1, 32>}, {pipeline_mode = #tpu.pipeline_mode<synchronous>, transform_indices = @transform_7, window_bounds = array<i64: 1, 32>}, {pipeline_mode = #tpu.pipeline_mode<synchronous>, transform_indices = @transform_8, window_bounds = array<i64: 1, 32>}, {pipeline_mode = #tpu.pipeline_mode<synchronous>, transform_indices = @transform_9, window_bounds = array<i64: 1, 32>}, {transform_indices = @transform_10, window_bounds = array<i64: 1, 8, 32>}]} {
    %c0 = arith.constant 0 : index
    %c0_0 = arith.constant 0 : index
    %c0_1 = arith.constant 0 : index
    %0 = vector.load %arg2[%c0, %c0_0, %c0_1] : memref<1x8x32xf32, #tpu.memory_space<vmem>>, vector<1x8x32xf32>
    %1 = vector.shape_cast %0 : vector<1x8x32xf32> to vector<8x32xf32>
    %2 = arith.truncf %1 : vector<8x32xf32> to vector<8x32xbf16>
    %c0_2 = arith.constant 0 : index
    %c0_3 = arith.constant 0 : index
    %c0_4 = arith.constant 0 : index
    %3 = vector.load %arg3[%c0_2, %c0_3, %c0_4] : memref<1x8x32xf32, #tpu.memory_space<vmem>>, vector<1x8x32xf32>
    %4 = vector.shape_cast %3 : vector<1x8x32xf32> to vector<8x32xf32>
    %5 = arith.truncf %4 : vector<8x32xf32> to vector<8x32xbf16>
    %c0_5 = arith.constant 0 : index
    %c0_6 = arith.constant 0 : index
    %6 = vector.load %arg4[%c0_5, %c0_6] : memref<32x32xbf16, #tpu.memory_space<vmem>>, vector<32x32xbf16>
    %cst = arith.constant dense<0.000000e+00> : vector<8x32xf32>
    %7 = tpu.matmul %2, %6, %cst {dimension_numbers = #tpu.dot_dimension_numbers<[1], [0], [0], [1], [0, 0, 1, 1], [], []>} : vector<8x32xbf16>, vector<32x32xbf16>, vector<8x32xf32> -> vector<8x32xf32>
    %c0_7 = arith.constant 0 : index
    %c0_8 = arith.constant 0 : index
    %8 = vector.load %arg8[%c0_7, %c0_8] : memref<1x32xf32, #tpu.memory_space<vmem>>, vector<1x32xf32>
    %9 = vector.broadcast %8 : vector<1x32xf32> to vector<8x32xf32>
    %10 = arith.addf %7, %9 : vector<8x32xf32>
    %c0_9 = arith.constant 0 : index
    %c0_10 = arith.constant 0 : index
    %11 = vector.load %arg5[%c0_9, %c0_10] : memref<32x32xbf16, #tpu.memory_space<vmem>>, vector<32x32xbf16>
    %cst_11 = arith.constant dense<0.000000e+00> : vector<8x32xf32>
    %12 = tpu.matmul %5, %11, %cst_11 {dimension_numbers = #tpu.dot_dimension_numbers<[1], [0], [0], [1], [0, 0, 1, 1], [], []>} : vector<8x32xbf16>, vector<32x32xbf16>, vector<8x32xf32> -> vector<8x32xf32>
    %c0_12 = arith.constant 0 : index
    %c0_13 = arith.constant 0 : index
    %13 = vector.load %arg9[%c0_12, %c0_13] : memref<1x32xf32, #tpu.memory_space<vmem>>, vector<1x32xf32>
    %14 = vector.broadcast %13 : vector<1x32xf32> to vector<8x32xf32>
    %15 = arith.addf %12, %14 : vector<8x32xf32>
    %c0_14 = arith.constant 0 : index
    %c0_15 = arith.constant 0 : index
    %16 = vector.load %arg6[%c0_14, %c0_15] : memref<32x32xbf16, #tpu.memory_space<vmem>>, vector<32x32xbf16>
    %cst_16 = arith.constant dense<0.000000e+00> : vector<8x32xf32>
    %17 = tpu.matmul %5, %16, %cst_16 {dimension_numbers = #tpu.dot_dimension_numbers<[1], [0], [0], [1], [0, 0, 1, 1], [], []>} : vector<8x32xbf16>, vector<32x32xbf16>, vector<8x32xf32> -> vector<8x32xf32>
    %c0_17 = arith.constant 0 : index
    %c0_18 = arith.constant 0 : index
    %18 = vector.load %arg10[%c0_17, %c0_18] : memref<1x32xf32, #tpu.memory_space<vmem>>, vector<1x32xf32>
    %19 = vector.broadcast %18 : vector<1x32xf32> to vector<8x32xf32>
    %20 = arith.addf %17, %19 : vector<8x32xf32>
    %21 = vector.shape_cast %10 : vector<8x32xf32> to vector<8x4x8xf32>
    %22 = tpu.transpose %21, [1, 0, 2] : vector<8x4x8xf32> -> vector<4x8x8xf32>
    %23 = arith.truncf %22 : vector<4x8x8xf32> to vector<4x8x8xbf16>
    %24 = vector.shape_cast %15 : vector<8x32xf32> to vector<8x4x8xf32>
    %25 = tpu.transpose %24, [1, 0, 2] : vector<8x4x8xf32> -> vector<4x8x8xf32>
    %26 = arith.truncf %25 : vector<4x8x8xf32> to vector<4x8x8xbf16>
    %27 = vector.shape_cast %20 : vector<8x32xf32> to vector<8x4x8xf32>
    %28 = tpu.transpose %27, [1, 0, 2] : vector<8x4x8xf32> -> vector<4x8x8xf32>
    %29 = arith.truncf %28 : vector<4x8x8xf32> to vector<4x8x8xbf16>
    "tpu.trace_start"() <{level = 10 : i32, message = "hqd,hkd->hqk"}> : () -> ()
    %cst_19 = arith.constant dense<0.000000e+00> : vector<4x8x8xf32>
    %30 = tpu.matmul %23, %26, %cst_19 {dimension_numbers = #tpu.dot_dimension_numbers<[2], [2], [1], [1], [0, 0, 0, 1, 1, 1], [0], [0]>} : vector<4x8x8xbf16>, vector<4x8x8xbf16>, vector<4x8x8xf32> -> vector<4x8x8xf32>
    "tpu.trace_stop"() : () -> ()
    %cst_20 = arith.constant dense<0xFF800000> : vector<4x8xf32>
    %31 = vector.multi_reduction <maximumf>, %30, %cst_20 [2] : vector<4x8x8xf32> to vector<4x8xf32>
    %32 = vector.shape_cast %31 : vector<4x8xf32> to vector<4x8x1xf32>
    %33 = vector.broadcast %32 : vector<4x8x1xf32> to vector<4x8x8xf32>
    %34 = arith.subf %30, %33 : vector<4x8x8xf32>
    %35 = math.exp %34 : vector<4x8x8xf32>
    %cst_21 = arith.constant dense<0.000000e+00> : vector<4x8xf32>
    %36 = vector.multi_reduction <add>, %35, %cst_21 [2] : vector<4x8x8xf32> to vector<4x8xf32>
    %37 = vector.shape_cast %36 : vector<4x8xf32> to vector<4x8x1xf32>
    %38 = arith.truncf %35 : vector<4x8x8xf32> to vector<4x8x8xbf16>
    "tpu.trace_start"() <{level = 10 : i32, message = "hqk,hkd->hqd"}> : () -> ()
    %cst_22 = arith.constant dense<0.000000e+00> : vector<4x8x8xf32>
    %39 = tpu.matmul %38, %29, %cst_22 {dimension_numbers = #tpu.dot_dimension_numbers<[2], [1], [1], [2], [0, 0, 0, 1, 1, 2], [0], [0]>} : vector<4x8x8xbf16>, vector<4x8x8xbf16>, vector<4x8x8xf32> -> vector<4x8x8xf32>
    "tpu.trace_stop"() : () -> ()
    %40 = tpu.reciprocal %37 {approx = true} : vector<4x8x1xf32> -> vector<4x8x1xf32>
    %41 = vector.broadcast %40 : vector<4x8x1xf32> to vector<4x8x8xf32>
    %42 = arith.mulf %39, %41 : vector<4x8x8xf32>
    %43 = arith.truncf %42 : vector<4x8x8xf32> to vector<4x8x8xbf16>
    %c0_23 = arith.constant 0 : index
    %c0_24 = arith.constant 0 : index
    %c0_25 = arith.constant 0 : index
    %44 = vector.load %arg7[%c0_23, %c0_24, %c0_25] : memref<4x8x32xbf16, #tpu.memory_space<vmem>>, vector<4x8x32xbf16>
    "tpu.trace_start"() <{level = 10 : i32, message = "hqd,hdc->hqc"}> : () -> ()
    %cst_26 = arith.constant dense<0.000000e+00> : vector<4x8x32xf32>
    %45 = tpu.matmul %43, %44, %cst_26 {dimension_numbers = #tpu.dot_dimension_numbers<[2], [1], [1], [2], [0, 0, 0, 1, 1, 2], [0], [0]>} : vector<4x8x8xbf16>, vector<4x8x32xbf16>, vector<4x8x32xf32> -> vector<4x8x32xf32>
    "tpu.trace_stop"() : () -> ()
    %cst_27 = arith.constant dense<0.000000e+00> : vector<8x32xf32>
    %46 = vector.multi_reduction <add>, %45, %cst_27 [0] : vector<4x8x32xf32> to vector<8x32xf32>
    %c0_28 = arith.constant 0 : index
    %c0_29 = arith.constant 0 : index
    %47 = vector.load %arg11[%c0_28, %c0_29] : memref<1x32xf32, #tpu.memory_space<vmem>>, vector<1x32xf32>
    %48 = vector.broadcast %47 : vector<1x32xf32> to vector<8x32xf32>
    %49 = arith.addf %46, %48 : vector<8x32xf32>
    %c0_30 = arith.constant 0 : index
    %c0_31 = arith.constant 0 : index
    %c0_32 = arith.constant 0 : index
    %50 = vector.load %arg12[%c0_30, %c0_31, %c0_32] : memref<1x8x32xf32, #tpu.memory_space<vmem>>, vector<1x8x32xf32>
    %51 = vector.shape_cast %50 : vector<1x8x32xf32> to vector<8x32xf32>
    %52 = vector.shape_cast %49 : vector<8x32xf32> to vector<1x8x32xf32>
    tpu.vector_store %arg12[%c0_30, %c0_31, %c0_32], %52 {strides = array<i32>} : memref<1x8x32xf32, #tpu.memory_space<vmem>>, vector<1x8x32xf32>,
    return
  }
  func.func @transform_0(%arg0: i32, %arg1: i32) -> (i32, i32, i32) {
    %c0_i32 = arith.constant 0 : i32
    %c0_i32_0 = arith.constant 0 : i32
    return %arg0, %arg1, %c0_i32 : i32, i32, i32
  }
  func.func @transform_1(%arg0: i32, %arg1: i32) -> (i32, i32, i32) {
    %c0_i32 = arith.constant 0 : i32
    %c0_i32_0 = arith.constant 0 : i32
    %c0_i32_1 = arith.constant 0 : i32
    return %arg0, %c0_i32, %c0_i32_0 : i32, i32, i32
  }
  func.func @transform_2(%arg0: i32, %arg1: i32) -> (i32, i32) {
    %c0_i32 = arith.constant 0 : i32
    %c0_i32_0 = arith.constant 0 : i32
    %c0_i32_1 = arith.constant 0 : i32
    return %c0_i32, %c0_i32_0 : i32, i32
  }
  func.func @transform_3(%arg0: i32, %arg1: i32) -> (i32, i32) {
    %c0_i32 = arith.constant 0 : i32
    %c0_i32_0 = arith.constant 0 : i32
    %c0_i32_1 = arith.constant 0 : i32
    return %c0_i32, %c0_i32_0 : i32, i32
  }
  func.func @transform_4(%arg0: i32, %arg1: i32) -> (i32, i32) {
    %c0_i32 = arith.constant 0 : i32
    %c0_i32_0 = arith.constant 0 : i32
    %c0_i32_1 = arith.constant 0 : i32
    return %c0_i32, %c0_i32_0 : i32, i32
  }
  func.func @transform_5(%arg0: i32, %arg1: i32) -> (i32, i32, i32) {
    %c0_i32 = arith.constant 0 : i32
    %c0_i32_0 = arith.constant 0 : i32
    %c0_i32_1 = arith.constant 0 : i32
    %c0_i32_2 = arith.constant 0 : i32
    return %c0_i32, %c0_i32_0, %c0_i32_1 : i32, i32, i32
  }
  func.func @transform_6(%arg0: i32, %arg1: i32) -> (i32, i32) {
    %c0_i32 = arith.constant 0 : i32
    %c0_i32_0 = arith.constant 0 : i32
    %c0_i32_1 = arith.constant 0 : i32
    return %c0_i32, %c0_i32_0 : i32, i32
  }
  func.func @transform_7(%arg0: i32, %arg1: i32) -> (i32, i32) {
    %c0_i32 = arith.constant 0 : i32
    %c0_i32_0 = arith.constant 0 : i32
    %c0_i32_1 = arith.constant 0 : i32
    return %c0_i32, %c0_i32_0 : i32, i32
  }
  func.func @transform_8(%arg0: i32, %arg1: i32) -> (i32, i32) {
    %c0_i32 = arith.constant 0 : i32
    %c0_i32_0 = arith.constant 0 : i32
    %c0_i32_1 = arith.constant 0 : i32
    return %c0_i32, %c0_i32_0 : i32, i32
  }
  func.func @transform_9(%arg0: i32, %arg1: i32) -> (i32, i32) {
    %c0_i32 = arith.constant 0 : i32
    %c0_i32_0 = arith.constant 0 : i32
    %c0_i32_1 = arith.constant 0 : i32
    return %c0_i32, %c0_i32_0 : i32, i32
  }
  func.func @transform_10(%arg0: i32, %arg1: i32) -> (i32, i32, i32) {
    %c0_i32 = arith.constant 0 : i32
    %c0_i32_0 = arith.constant 0 : i32
    return %arg0, %arg1, %c0_i32 : i32, i32, i32
  }
}

</mosaic_0001>

<llo_original>
// kernel: tpu_custom_call.1
$region0: #{tpu_custom_call.1}
  #allocation0 [shape = 'u32[]', space=smem, size = 0x4, offset = 0x4, fixed_abs, tag = 'smem constant byte address 0x4 - core index']
  #allocation1 [shape = 'u32[144,128]{1,0:T(1,128)}', space=vmem, size = 0x12000, scoped, tag = 'internal scratch']
  %s0 = inlined_call_operand.hbm [shape: f32[2,8,32], index: 0, kind: input, shape index: {}]
  %s1 = inlined_call_operand.hbm [shape: f32[2,8,32], index: 1, kind: input, shape index: {}]
  %s2 = inlined_call_operand.hbm [shape: bf16[32,32], index: 2, kind: input, shape index: {}]
  %s3 = inlined_call_operand.hbm [shape: bf16[32,32], index: 3, kind: input, shape index: {}]
  %s4 = inlined_call_operand.hbm [shape: bf16[32,32], index: 4, kind: input, shape index: {}]
  %s5 = inlined_call_operand.vmem [shape: bf16[4,8,32], index: 5, kind: input, shape index: {}]
  %s6 = inlined_call_operand.vmem [shape: f32[1,32], index: 6, kind: input, shape index: {}]
  %s7 = inlined_call_operand.vmem [shape: f32[1,32], index: 7, kind: input, shape index: {}]
  %s8 = inlined_call_operand.vmem [shape: f32[1,32], index: 8, kind: input, shape index: {}]
  %s9 = inlined_call_operand.vmem [shape: f32[1,32], index: 9, kind: input, shape index: {}]
  %s10 = inlined_call_operand.hbm [shape: f32[2,8,32], index: 10, kind: output, shape index: {}]
  %s11 = sld [smem:[#allocation0]]
  $region93: #{tpu_custom_call.1} parent=0
    _
  %s13 = ssub.s32 1, %s11
  %s14 = scalar_select 0, %s13, %s11
  $region1: #{tpu_custom_call.1} parent=0
    #allocation2 [shape = 'u8[8192]{0}', space=vmem, size = 0x2000, scoped, tag = 'input window, operand 0']
    #allocation3 [shape = 's32[2]{0}', space=sflag, size = 0x8, scoped, tag = 'scoped memory for tpu_custom_call.1']
    #allocation4 [shape = 's32[2]{0}', space=sflag, size = 0x8, scoped, tag = 'scoped memory for tpu_custom_call.1']
    #allocation5 [shape = 'u8[8192]{0}', space=vmem, size = 0x2000, scoped, tag = 'input window, operand 1']
    #allocation6 [shape = 's32[2]{0}', space=sflag, size = 0x8, scoped, tag = 'scoped memory for tpu_custom_call.1']
    #allocation7 [shape = 'u8[8192]{0}', space=vmem, size = 0x2000, scoped, tag = 'input window, operand 2, single buffered']
    #allocation8 [shape = 'u8[8192]{0}', space=vmem, size = 0x2000, scoped, tag = 'input window, operand 3, single buffered']
    #allocation9 [shape = 's32[1]{0}', space=sflag, size = 0x4, scoped, tag = 'scoped memory for tpu_custom_call.1']
    #allocation10 [shape = 'u8[8192]{0}', space=vmem, size = 0x2000, scoped, tag = 'input window, operand 4, single buffered']
    #allocation11 [shape = 'u8[8192]{0}', space=vmem, size = 0x2000, scoped, tag = 'output window, operand 0']
    %15 = vsyncpa [#allocation3], 0
    %s16 = scalar_lea.sflag [#allocation3], 1
    %17 = vsyncpa %s16, 0
    %18 = vsyncpa [#allocation6], 0
    %s19 = scalar_lea.sflag [#allocation6], 1
    %20 = vsyncpa %s19, 0
    %21 = vsyncpa [#allocation9], 0
    %22 = vsyncpa [#allocation4], 0
    %s23 = scalar_lea.sflag [#allocation4], 1
    %24 = vsyncpa %s23, 0
    loop: start=0, step=1, limit=4
    $region2: #{tpu_custom_call.1} parent=1 // loop_pre_header
      _
    $region3: #{tpu_custom_call.1} parent=1 // loop_header
      %s26 = sphi 0, %s30
      %p27 = scmp.ge.s32.totalorder %s26, 4
      %s33 = sphi 0, %s45
      %s34 = sphi 0, %s41
      %s35 = sphi 0, %s33
      %s36 = sphi 0, %s34
      %s37 = sphi 0, %s35
      %s38 = sphi 0, %s36
      %s50 = sphi 0, %s52
      %s53 = sphi 0, %s50
      %s54 = sphi 0, %s53
      %s70 = sphi 0, %s54
      %s76 = sphi 0, %s78
      %s79 = sphi 0, %s76
      %s80 = sphi 0, %s79
      %s96 = sphi 0, %s80
      %s100 = sphi 0, %s100
      %s102 = sphi 0, %s100
      %s103 = sphi 0, %s102
      %s117 = sphi 0, %s103
      %s121 = sphi 0, %s121
      %s123 = sphi 0, %s121
      %s124 = sphi 0, %s123
      %s138 = sphi 0, %s124
      %s142 = sphi 0, %s142
      %s144 = sphi 0, %s142
      %s145 = sphi 0, %s144
      %s159 = sphi 0, %s145
      %s163 = sphi 0, %s163
      %s165 = sphi 0, %s163
      %s166 = sphi 0, %s165
      %s180 = sphi 0, %s166
      %s184 = sphi 0, %s184
      %s186 = sphi 0, %s184
      %s187 = sphi 0, %s186
      %s201 = sphi 0, %s187
      %s205 = sphi 0, %s205
      %s207 = sphi 0, %s205
      %s208 = sphi 0, %s207
      %s222 = sphi 0, %s208
      %s226 = sphi 0, %s226
      %s228 = sphi 0, %s226
      %s229 = sphi 0, %s228
      %s243 = sphi 0, %s229
      %s247 = sphi 0, %s247
      %s249 = sphi 0, %s247
      %s250 = sphi 0, %s249
      %s264 = sphi 0, %s250
      %s272 = sphi 0, %s274
      %s275 = sphi 0, %s272
      %s276 = sphi 0, %s275
      %s292 = sphi 0, %s276
    $region4: #{tpu_custom_call.1} parent=1 // loop_header_branch
      %29 = sbr.rel (%p27) target = $region8
    $region5: #{tpu_custom_call.1} parent=1 // loop_body
      %s31 = ssub.s32 %s26, 1
      %s32 = ssub.s32 %s26, 2
      %s39 = sadd.s32 1, %s34
      %p40 = scmp.ge.s32.totalorder %s39, 1
      %s41 = scalar_select %p40, 0, %s39
      %s42 = sadd.s32 1, %s33
      %s43 = scalar_select %p40, %s42, %s33
      %p44 = scmp.ge.s32.totalorder %s43, 2
      %s45 = scalar_select %p44, 0, %s43
      %s46 = ssub.s32 %s33, %s45
      %s47 = ssub.s32 %s34, %s41
      %s48 = sor.u32 %s46, %s47
      %p49 = scmp.eq.s32.totalorder %s48, 0
      %s51 = sadd.s32 %s50, 1
      %s52 = scalar_select %p49, %s50, %s51
      %p55 = pneg %p49
      %p56 = scmp.eq.s32.totalorder %s26, 1
      %p57 = por %p55, %p56
      %p58 = scmp.ne.s32.totalorder %s50, %s53
      %p59 = scmp.eq.s32.totalorder %s26, 0
      %p60 = por %p58, %p59
      %p61 = scmp.ne.s32.totalorder %s50, %s53
      %p62 = scmp.eq.s32.totalorder %s31, 1
      %p63 = por %p61, %p62
      %p64 = scmp.ne.s32.totalorder %s53, %s54
      %p65 = scmp.eq.s32.totalorder %s31, 0
      %p66 = por %p64, %p65
      %p67 = scmp.ne.s32.totalorder %s53, %s54
      %p68 = scmp.eq.s32.totalorder %s32, 1
      %p69 = por %p67, %p68
      %p71 = scmp.ne.s32.totalorder %s54, %s70
      %p72 = scmp.eq.s32.totalorder %s32, 0
      %p73 = por %p71, %p72
      %s74 = ssub.s32 %s33, %s45
      %p75 = scmp.eq.s32.totalorder %s74, 0
      %s77 = sadd.s32 %s76, 1
      %s78 = scalar_select %p75, %s76, %s77
      %p81 = pneg %p75
      %p82 = scmp.eq.s32.totalorder %s26, 1
      %p83 = por %p81, %p82
      %p84 = scmp.ne.s32.totalorder %s76, %s79
      %p85 = scmp.eq.s32.totalorder %s26, 0
      %p86 = por %p84, %p85
      %p87 = scmp.ne.s32.totalorder %s76, %s79
      %p88 = scmp.eq.s32.totalorder %s31, 1
      %p89 = por %p87, %p88
      %p90 = scmp.ne.s32.totalorder %s79, %s80
      %p91 = scmp.eq.s32.totalorder %s31, 0
      %p92 = por %p90, %p91
      %p93 = scmp.ne.s32.totalorder %s79, %s80
      %p94 = scmp.eq.s32.totalorder %s32, 1
      %p95 = por %p93, %p94
      %p97 = scmp.ne.s32.totalorder %s80, %s96
      %p98 = scmp.eq.s32.totalorder %s32, 0
      %p99 = por %p97, %p98
      %s101 = sadd.s32 %s100, 1
      %p104 = scmp.eq.s32.totalorder %s26, 1
      %p105 = scmp.ne.s32.totalorder %s100, %s102
      %p106 = scmp.eq.s32.totalorder %s26, 0
      %p107 = por %p105, %p106
      %p108 = scmp.ne.s32.totalorder %s100, %s102
      %p109 = scmp.eq.s32.totalorder %s31, 1
      %p110 = por %p108, %p109
      %p111 = scmp.ne.s32.totalorder %s102, %s103
      %p112 = scmp.eq.s32.totalorder %s31, 0
      %p113 = por %p111, %p112
      %p114 = scmp.ne.s32.totalorder %s102, %s103
      %p115 = scmp.eq.s32.totalorder %s32, 1
      %p116 = por %p114, %p115
      %p118 = scmp.ne.s32.totalorder %s103, %s117
      %p119 = scmp.eq.s32.totalorder %s32, 0
      %p120 = por %p118, %p119
      %s122 = sadd.s32 %s121, 1
      %p125 = scmp.eq.s32.totalorder %s26, 1
      %p126 = scmp.ne.s32.totalorder %s121, %s123
      %p127 = scmp.eq.s32.totalorder %s26, 0
      %p128 = por %p126, %p127
      %p129 = scmp.ne.s32.totalorder %s121, %s123
      %p130 = scmp.eq.s32.totalorder %s31, 1
      %p131 = por %p129, %p130
      %p132 = scmp.ne.s32.totalorder %s123, %s124
      %p133 = scmp.eq.s32.totalorder %s31, 0
      %p134 = por %p132, %p133
      %p135 = scmp.ne.s32.totalorder %s123, %s124
      %p136 = scmp.eq.s32.totalorder %s32, 1
      %p137 = por %p135, %p136
      %p139 = scmp.ne.s32.totalorder %s124, %s138
      %p140 = scmp.eq.s32.totalorder %s32, 0
      %p141 = por %p139, %p140
      %s143 = sadd.s32 %s142, 1
      %p146 = scmp.eq.s32.totalorder %s26, 1
      %p147 = scmp.ne.s32.totalorder %s142, %s144
      %p148 = scmp.eq.s32.totalorder %s26, 0
      %p149 = por %p147, %p148
      %p150 = scmp.ne.s32.totalorder %s142, %s144
      %p151 = scmp.eq.s32.totalorder %s31, 1
      %p152 = por %p150, %p151
      %p153 = scmp.ne.s32.totalorder %s144, %s145
      %p154 = scmp.eq.s32.totalorder %s31, 0
      %p155 = por %p153, %p154
      %p156 = scmp.ne.s32.totalorder %s144, %s145
      %p157 = scmp.eq.s32.totalorder %s32, 1
      %p158 = por %p156, %p157
      %p160 = scmp.ne.s32.totalorder %s145, %s159
      %p161 = scmp.eq.s32.totalorder %s32, 0
      %p162 = por %p160, %p161
      %s164 = sadd.s32 %s163, 1
      %p167 = scmp.eq.s32.totalorder %s26, 1
      %p168 = scmp.ne.s32.totalorder %s163, %s165
      %p169 = scmp.eq.s32.totalorder %s26, 0
      %p170 = por %p168, %p169
      %p171 = scmp.ne.s32.totalorder %s163, %s165
      %p172 = scmp.eq.s32.totalorder %s31, 1
      %p173 = por %p171, %p172
      %p174 = scmp.ne.s32.totalorder %s165, %s166
      %p175 = scmp.eq.s32.totalorder %s31, 0
      %p176 = por %p174, %p175
      %p177 = scmp.ne.s32.totalorder %s165, %s166
      %p178 = scmp.eq.s32.totalorder %s32, 1
      %p179 = por %p177, %p178
      %p181 = scmp.ne.s32.totalorder %s166, %s180
      %p182 = scmp.eq.s32.totalorder %s32, 0
      %p183 = por %p181, %p182
      %s185 = sadd.s32 %s184, 1
      %p188 = scmp.eq.s32.totalorder %s26, 1
      %p189 = scmp.ne.s32.totalorder %s184, %s186
      %p190 = scmp.eq.s32.totalorder %s26, 0
      %p191 = por %p189, %p190
      %p192 = scmp.ne.s32.totalorder %s184, %s186
      %p193 = scmp.eq.s32.totalorder %s31, 1
      %p194 = por %p192, %p193
      %p195 = scmp.ne.s32.totalorder %s186, %s187
      %p196 = scmp.eq.s32.totalorder %s31, 0
      %p197 = por %p195, %p196
      %p198 = scmp.ne.s32.totalorder %s186, %s187
      %p199 = scmp.eq.s32.totalorder %s32, 1
      %p200 = por %p198, %p199
      %p202 = scmp.ne.s32.totalorder %s187, %s201
      %p203 = scmp.eq.s32.totalorder %s32, 0
      %p204 = por %p202, %p203
      %s206 = sadd.s32 %s205, 1
      %p209 = scmp.eq.s32.totalorder %s26, 1
      %p210 = scmp.ne.s32.totalorder %s205, %s207
      %p211 = scmp.eq.s32.totalorder %s26, 0
      %p212 = por %p210, %p211
      %p213 = scmp.ne.s32.totalorder %s205, %s207
      %p214 = scmp.eq.s32.totalorder %s31, 1
      %p215 = por %p213, %p214
      %p216 = scmp.ne.s32.totalorder %s207, %s208
      %p217 = scmp.eq.s32.totalorder %s31, 0
      %p218 = por %p216, %p217
      %p219 = scmp.ne.s32.totalorder %s207, %s208
      %p220 = scmp.eq.s32.totalorder %s32, 1
      %p221 = por %p219, %p220
      %p223 = scmp.ne.s32.totalorder %s208, %s222
      %p224 = scmp.eq.s32.totalorder %s32, 0
      %p225 = por %p223, %p224
      %s227 = sadd.s32 %s226, 1
      %p230 = scmp.eq.s32.totalorder %s26, 1
      %p231 = scmp.ne.s32.totalorder %s226, %s228
      %p232 = scmp.eq.s32.totalorder %s26, 0
      %p233 = por %p231, %p232
      %p234 = scmp.ne.s32.totalorder %s226, %s228
      %p235 = scmp.eq.s32.totalorder %s31, 1
      %p236 = por %p234, %p235
      %p237 = scmp.ne.s32.totalorder %s228, %s229
      %p238 = scmp.eq.s32.totalorder %s31, 0
      %p239 = por %p237, %p238
      %p240 = scmp.ne.s32.totalorder %s228, %s229
      %p241 = scmp.eq.s32.totalorder %s32, 1
      %p242 = por %p240, %p241
      %p244 = scmp.ne.s32.totalorder %s229, %s243
      %p245 = scmp.eq.s32.totalorder %s32, 0
      %p246 = por %p244, %p245
      %s248 = sadd.s32 %s247, 1
      %p251 = scmp.eq.s32.totalorder %s26, 1
      %p252 = scmp.ne.s32.totalorder %s247, %s249
      %p253 = scmp.eq.s32.totalorder %s26, 0
      %p254 = por %p252, %p253
      %p255 = scmp.ne.s32.totalorder %s247, %s249
      %p256 = scmp.eq.s32.totalorder %s31, 1
      %p257 = por %p255, %p256
      %p258 = scmp.ne.s32.totalorder %s249, %s250
      %p259 = scmp.eq.s32.totalorder %s31, 0
      %p260 = por %p258, %p259
      %p261 = scmp.ne.s32.totalorder %s249, %s250
      %p262 = scmp.eq.s32.totalorder %s32, 1
      %p263 = por %p261, %p262
      %p265 = scmp.ne.s32.totalorder %s250, %s264
      %p266 = scmp.eq.s32.totalorder %s32, 0
      %p267 = por %p265, %p266
      %s268 = ssub.s32 %s33, %s45
      %s269 = ssub.s32 %s34, %s41
      %s270 = sor.u32 %s268, %s269
      %p271 = scmp.eq.s32.totalorder %s270, 0
      %s273 = sadd.s32 %s272, 1
      %s274 = scalar_select %p271, %s272, %s273
      %p277 = pneg %p271
      %p278 = scmp.eq.s32.totalorder %s26, 1
      %p279 = por %p277, %p278
      %p280 = scmp.ne.s32.totalorder %s272, %s275
      %p281 = scmp.eq.s32.totalorder %s26, 0
      %p282 = por %p280, %p281
      %p283 = scmp.ne.s32.totalorder %s272, %s275
      %p284 = scmp.eq.s32.totalorder %s31, 1
      %p285 = por %p283, %p284
      %p286 = scmp.ne.s32.totalorder %s275, %s276
      %p287 = scmp.eq.s32.totalorder %s31, 0
      %p288 = por %p286, %p287
      %p289 = scmp.ne.s32.totalorder %s275, %s276
      %p290 = scmp.eq.s32.totalorder %s32, 1
      %p291 = por %p289, %p290
      %p293 = scmp.ne.s32.totalorder %s276, %s292
      %p294 = scmp.eq.s32.totalorder %s32, 0
      %p295 = por %p293, %p294
      %p296 = scmp.le.s32.totalorder 1, %s26
      %p297 = scmp.lt.s32.totalorder %s26, 3
      %p298 = pnand %p296, %p297
      %p299 = pneg %p298
      // Predicated region
      $region9: #{tpu_custom_call.1} parent=5 // pred_check
        _
      $region10: #{tpu_custom_call.1} parent=5 // pred_check_branch
        %301 = sbr.rel (%p298) target = $region12
      $region11: #{tpu_custom_call.1} parent=5 // pred_region
        %s302 = ssub.s32 %s26, 1
        // Predicated region
        $region13: #{tpu_custom_call.1} parent=11 // pred_check
          %p303 = pneg %p113
        $region14: #{tpu_custom_call.1} parent=11 // pred_check_branch
          %305 = sbr.rel (%p303) target = $region16
        $region15: #{tpu_custom_call.1} parent=11 // pred_region
          %s307 = ssub.s32 256, 256
          %308 = vsyncadd [#allocation6], %s307
          %s309 = sshll.u32 [#allocation7], 4
          %s310 = int_to_ptr.vmem [resolvable:$true] %s309
          %315 = dma.hbm_to_vmem [thread:$0]  %s2, 256, %s310, [#allocation6], 64, 64, 4
        $region16: #{tpu_custom_call.1} parent=11 // pred_fallthru
          _
        // Predicated region
        $region17: #{tpu_custom_call.1} parent=11 // pred_check
          %p316 = pneg %p134
        $region18: #{tpu_custom_call.1} parent=11 // pred_check_branch
          %318 = sbr.rel (%p316) target = $region20
        $region19: #{tpu_custom_call.1} parent=11 // pred_region
          %s320 = ssub.s32 256, 256
          %321 = vsyncadd [#allocation9], %s320
          %s322 = sshll.u32 [#allocation8], 4
          %s323 = int_to_ptr.vmem [resolvable:$true] %s322
          %328 = dma.hbm_to_vmem [thread:$0]  %s3, 256, %s323, [#allocation9], 64, 64, 4
        $region20: #{tpu_custom_call.1} parent=11 // pred_fallthru
          _
        // Predicated region
        $region21: #{tpu_custom_call.1} parent=11 // pred_check
          %p329 = pneg %p155
        $region22: #{tpu_custom_call.1} parent=11 // pred_check_branch
          %331 = sbr.rel (%p329) target = $region24
        $region23: #{tpu_custom_call.1} parent=11 // pred_region
          %s333 = ssub.s32 256, 256
          %334 = vsyncadd [#allocation9], %s333
          %s335 = sshll.u32 [#allocation10], 4
          %s336 = int_to_ptr.vmem [resolvable:$true] %s335
          %341 = dma.hbm_to_vmem [thread:$0]  %s4, 256, %s336, [#allocation9], 64, 64, 4
        $region24: #{tpu_custom_call.1} parent=11 // pred_fallthru
          _
        // Predicated region
        $region25: #{tpu_custom_call.1} parent=11 // pred_check
          %p342 = pneg %p176
        $region26: #{tpu_custom_call.1} parent=11 // pred_check_branch
          %344 = sbr.rel (%p342) target = $region28
        $region27: #{tpu_custom_call.1} parent=11 // pred_region
          _
        $region28: #{tpu_custom_call.1} parent=11 // pred_fallthru
          _
        // Predicated region
        $region29: #{tpu_custom_call.1} parent=11 // pred_check
          %p345 = pneg %p197
        $region30: #{tpu_custom_call.1} parent=11 // pred_check_branch
          %347 = sbr.rel (%p345) target = $region32
        $region31: #{tpu_custom_call.1} parent=11 // pred_region
          _
        $region32: #{tpu_custom_call.1} parent=11 // pred_fallthru
          _
        // Predicated region
        $region33: #{tpu_custom_call.1} parent=11 // pred_check
          %p348 = pneg %p218
        $region34: #{tpu_custom_call.1} parent=11 // pred_check_branch
          %350 = sbr.rel (%p348) target = $region36
        $region35: #{tpu_custom_call.1} parent=11 // pred_region
          _
        $region36: #{tpu_custom_call.1} parent=11 // pred_fallthru
          _
        // Predicated region
        $region37: #{tpu_custom_call.1} parent=11 // pred_check
          %p351 = pneg %p239
        $region38: #{tpu_custom_call.1} parent=11 // pred_check_branch
          %353 = sbr.rel (%p351) target = $region40
        $region39: #{tpu_custom_call.1} parent=11 // pred_region
          _
        $region40: #{tpu_custom_call.1} parent=11 // pred_fallthru
          _
        // Predicated region
        $region41: #{tpu_custom_call.1} parent=11 // pred_check
          %p354 = pneg %p260
        $region42: #{tpu_custom_call.1} parent=11 // pred_check_branch
          %356 = sbr.rel (%p354) target = $region44
        $region43: #{tpu_custom_call.1} parent=11 // pred_region
          _
        $region44: #{tpu_custom_call.1} parent=11 // pred_fallthru
          _
      $region12: #{tpu_custom_call.1} parent=5 // pred_fallthru
        _
      %p357 = scmp.lt.s32.totalorder %s26, 2
      // Predicated region
      $region45: #{tpu_custom_call.1} parent=5 // pred_check
        %p358 = pneg %p357
      $region46: #{tpu_custom_call.1} parent=5 // pred_check_branch
        %360 = sbr.rel (%p358) target = $region48
      $region47: #{tpu_custom_call.1} parent=5 // pred_region
        // Predicated region
        $region49: #{tpu_custom_call.1} parent=47 // pred_check
          %p361 = pneg %p60
        $region50: #{tpu_custom_call.1} parent=47 // pred_check_branch
          %363 = sbr.rel (%p361) target = $region52
        $region51: #{tpu_custom_call.1} parent=47 // pred_region
          %s364 = sand.u32 %s50, 1
          %s365 = scalar_lea.sflag [#allocation3], %s364
          %s366 = sand.u32 %s50, 1
          %s367 = smul.addr %s366, 8
          %s368 = scalar_lea.vmem [#allocation2], %s367
          %s370 = ssub.s32 128, 128
          %371 = vsyncadd %s365, %s370
          %s372 = sadd.s32 %s34, %s33
          %s373 = smul.addr %s372, 128
          %s374 = scalar_lea.hbm %s0, %s373
          %s376 = sshll.u32 %s368, 4
          %s377 = int_to_ptr.vmem [resolvable:$true] %s376
          %379 = dma.hbm_to_vmem [thread:$0]  %s374, 128, %s377, %s365
        $region52: #{tpu_custom_call.1} parent=47 // pred_fallthru
          _
        // Predicated region
        $region53: #{tpu_custom_call.1} parent=47 // pred_check
          %p380 = pneg %p86
        $region54: #{tpu_custom_call.1} parent=47 // pred_check_branch
          %382 = sbr.rel (%p380) target = $region56
        $region55: #{tpu_custom_call.1} parent=47 // pred_region
          %s383 = sand.u32 %s26, 1
          %s384 = scalar_lea.sflag [#allocation6], %s383
          %s385 = sand.u32 %s76, 1
          %s386 = smul.addr %s385, 8
          %s387 = scalar_lea.vmem [#allocation5], %s386
          %s389 = ssub.s32 128, 128
          %390 = vsyncadd %s384, %s389
          %s391 = smul.addr %s33, 128
          %s392 = scalar_lea.hbm %s1, %s391
          %s394 = sshll.u32 %s387, 4
          %s395 = int_to_ptr.vmem [resolvable:$true] %s394
          %397 = dma.hbm_to_vmem [thread:$0]  %s392, 128, %s395, %s384
        $region56: #{tpu_custom_call.1} parent=47 // pred_fallthru
          _
      $region48: #{tpu_custom_call.1} parent=5 // pred_fallthru
        _
      %p398 = scmp.le.s32.totalorder 1, %s26
      %p399 = scmp.lt.s32.totalorder %s26, 3
      %p400 = pnand %p398, %p399
      %p401 = pneg %p400
      // Predicated region
      $region57: #{tpu_custom_call.1} parent=5 // pred_check
        _
      $region58: #{tpu_custom_call.1} parent=5 // pred_check_branch
        %403 = sbr.rel (%p400) target = $region60
      $region59: #{tpu_custom_call.1} parent=5 // pred_region
        %s404 = ssub.s32 %s26, 1
        %s405 = sand.u32 %s53, 1
        %s406 = scalar_lea.sflag [#allocation3], %s405
        %s407 = sand.u32 %s53, 1
        %s408 = smul.addr %s407, 8
        %s409 = scalar_lea.vmem [#allocation2], %s408
        // Predicated region
        $region61: #{tpu_custom_call.1} parent=59 // pred_check
          %p410 = pneg %p66
        $region62: #{tpu_custom_call.1} parent=59 // pred_check_branch
          %412 = sbr.rel (%p410) target = $region64
        $region63: #{tpu_custom_call.1} parent=59 // pred_region
          %413 = dma.done %s406, 128
        $region64: #{tpu_custom_call.1} parent=59 // pred_fallthru
          _
        %s414 = sand.u32 %s31, 1
        %s415 = scalar_lea.sflag [#allocation6], %s414
        %s416 = sand.u32 %s79, 1
        %s417 = smul.addr %s416, 8
        %s418 = scalar_lea.vmem [#allocation5], %s417
        // Predicated region
        $region65: #{tpu_custom_call.1} parent=59 // pred_check
          %p419 = pneg %p92
        $region66: #{tpu_custom_call.1} parent=59 // pred_check_branch
          %421 = sbr.rel (%p419) target = $region68
        $region67: #{tpu_custom_call.1} parent=59 // pred_region
          %422 = dma.done %s415, 128
        $region68: #{tpu_custom_call.1} parent=59 // pred_fallthru
          _
        // Predicated region
        $region69: #{tpu_custom_call.1} parent=59 // pred_check
          %p423 = pneg %p113
        $region70: #{tpu_custom_call.1} parent=59 // pred_check_branch
          %425 = sbr.rel (%p423) target = $region72
        $region71: #{tpu_custom_call.1} parent=59 // pred_region
          %426 = dma.done [#allocation6], 256
        $region72: #{tpu_custom_call.1} parent=59 // pred_fallthru
          _
        // Predicated region
        $region73: #{tpu_custom_call.1} parent=59 // pred_check
          %p427 = pneg %p134
        $region74: #{tpu_custom_call.1} parent=59 // pred_check_branch
          %429 = sbr.rel (%p427) target = $region76
        $region75: #{tpu_custom_call.1} parent=59 // pred_region
          %430 = dma.done [#allocation9], 256
        $region76: #{tpu_custom_call.1} parent=59 // pred_fallthru
          _
        // Predicated region
        $region77: #{tpu_custom_call.1} parent=59 // pred_check
          %p431 = pneg %p155
        $region78: #{tpu_custom_call.1} parent=59 // pred_check_branch
          %433 = sbr.rel (%p431) target = $region80
        $region79: #{tpu_custom_call.1} parent=59 // pred_region
          %434 = dma.done [#allocation9], 256
        $region80: #{tpu_custom_call.1} parent=59 // pred_fallthru
          _
        %s435 = sand.u32 %s53, 1
        %s436 = scalar_lea.sflag [#allocation3], %s435
        %s437 = sand.u32 %s53, 1
        %s438 = smul.addr %s437, 8
        %s439 = scalar_lea.vmem [#allocation2], %s438
        %p440 = pneg %p66
        %p441 = pneg %p63
        %s442 = sand.u32 %s31, 1
        %s443 = scalar_lea.sflag [#allocation6], %s442
        %s444 = sand.u32 %s79, 1
        %s445 = smul.addr %s444, 8
        %s446 = scalar_lea.vmem [#allocation5], %s445
        %p447 = pneg %p92
        %p448 = pneg %p89
        %p449 = pneg %p113
        %p450 = pneg %p110
        %p451 = pneg %p134
        %p452 = pneg %p131
        %p453 = pneg %p155
        %p454 = pneg %p152
        %p455 = pneg %p176
        %p456 = pneg %p173
        %p457 = pneg %p197
        %p458 = pneg %p194
        %p459 = pneg %p218
        %p460 = pneg %p215
        %p461 = pneg %p239
        %p462 = pneg %p236
        %p463 = pneg %p260
        %p464 = pneg %p257
        %p465 = pneg %p288
        %p466 = pneg %p285
        %s467 = sand.u32 %s275, 1
        %s468 = scalar_lea.sflag [#allocation4], %s467
        %s469 = sand.u32 %s275, 1
        %s470 = smul.addr %s469, 8
        %s471 = scalar_lea.vmem [#allocation11], %s470
        %v473 = vld [vmem:[%s409] sm:$0xff]
        %v474 = vpack.c.bf16 %v473, %v473
        %v475 = vld [vmem:[%s418] sm:$0xff]
        %v476 = vpack.c.bf16 %v475, %v475
        %v477 = vld [vmem:[#allocation7] sm:$0xf]
        %v478 = vld [vmem:[#allocation7 + $0x4] sm:$0xf]
        %v479 = vld [vmem:[#allocation7 + $0x8] sm:$0xf]
        %v480 = vld [vmem:[#allocation7 + $0xc] sm:$0xf]
        %v481 = vld [vmem:[%s6] sm:$0x1]
        %v483 = vlaneseq
        %v484 = vshrl.u32 %v483, 7
        %v485 = vsub.s32 0, %v484
        %v486 = vrot.slane %v481, %v485
        %v492 = vunpack.c.l.b16 %v477
        %v493 = vunpack.c.l.b16 %v478
        %v494 = vunpack.c.l.b16 %v479
        %v495 = vunpack.c.l.b16 %v480
        %v496 = vpack.c.b16 %v493, %v492
        %v497 = vpack.c.b16 %v495, %v494
        %vm500 = vcmask 261120
        %v502 = vsel %vm500, %v474, 0
        %504 = vmatprep.subr.bf16.mxu0 0
        %505 = vmatpush1.bf16.msra.mxu0 %v496
        %506 = vmatprep.subr.bf16.mxu0 0
        %507 = vmatpush1.bf16.msra.mxu0 %v497
        %508 = vmatprep.subr.bf16.mxu0 0
        %509 = vmatpush1.bf16.msra.mxu0 0
        %510 = vmatprep.subr.bf16.mxu0 0
        %511 = vmatpush1.bf16.msra.mxu0 0
        %512 = vmatprep.subr.bf16.mxu0 0
        %513 = vmatpush1.bf16.msra.mxu0 0
        %514 = vmatprep.subr.bf16.mxu0 0
        %515 = vmatpush1.bf16.msra.mxu0 0
        %516 = vmatprep.subr.bf16.mxu0 0
        %517 = vmatpush1.bf16.msra.mxu0 0
        %518 = vmatprep.subr.bf16.mxu0 0
        %519 = vmatpush1.bf16.msra.mxu0 0
        %520 = vmatprep.subr.bf16.mxu0 0
        %521 = vmatpush1.bf16.msra.mxu0 0
        %522 = vmatprep.subr.bf16.mxu0 0
        %523 = vmatpush1.bf16.msra.mxu0 0
        %524 = vmatprep.subr.bf16.mxu0 0
        %525 = vmatpush1.bf16.msra.mxu0 0
        %526 = vmatprep.subr.bf16.mxu0 0
        %527 = vmatpush1.bf16.msra.mxu0 0
        %528 = vmatprep.subr.bf16.mxu0 0
        %529 = vmatpush1.bf16.msra.mxu0 0
        %530 = vmatprep.subr.bf16.mxu0 0
        %531 = vmatpush1.bf16.msra.mxu0 0
        %532 = vmatprep.subr.bf16.mxu0 0
        %533 = vmatpush1.bf16.msra.mxu0 0
        %534 = vmatprep.subr.bf16.mxu0 0
        %535 = vmatpush1.bf16.msra.mxu0 0
        %536 = vmatprep.mubr.bf16.mxu0 0
        %537 = vmatmul.mubr.bf16.gmra.mrb[0].mxu0 %v502
        %v538 = vpop.f32.mrb[0].mxu0
        %v539 = vadd.f32 %v486, %v538
        %v540 = vpop.f32.mrb[0].mxu0
        %v541 = vpop.f32.mrb[0].mxu0
        %v542 = vpop.f32.mrb[0].mxu0
        %543 = vdwg.mxu0
        %v544 = vld [vmem:[#allocation8] sm:$0xf]
        %v545 = vld [vmem:[#allocation8 + $0x4] sm:$0xf]
        %v546 = vld [vmem:[#allocation8 + $0x8] sm:$0xf]
        %v547 = vld [vmem:[#allocation8 + $0xc] sm:$0xf]
        %v548 = vld [vmem:[%s7] sm:$0x1]
        %v550 = vlaneseq
        %v551 = vshrl.u32 %v550, 7
        %v552 = vsub.s32 0, %v551
        %v553 = vrot.slane %v548, %v552
        %v559 = vunpack.c.l.b16 %v544
        %v560 = vunpack.c.l.b16 %v545
        %v561 = vunpack.c.l.b16 %v546
        %v562 = vunpack.c.l.b16 %v547
        %v563 = vpack.c.b16 %v560, %v559
        %v564 = vpack.c.b16 %v562, %v561
        %v568 = vsel %vm500, %v476, 0
        %570 = vmatprep.subr.bf16.mxu0 0
        %571 = vmatpush1.bf16.msra.mxu0 %v563
        %572 = vmatprep.subr.bf16.mxu0 0
        %573 = vmatpush1.bf16.msra.mxu0 %v564
        %574 = vmatprep.subr.bf16.mxu0 0
        %575 = vmatpush1.bf16.msra.mxu0 0
        %576 = vmatprep.subr.bf16.mxu0 0
        %577 = vmatpush1.bf16.msra.mxu0 0
        %578 = vmatprep.subr.bf16.mxu0 0
        %579 = vmatpush1.bf16.msra.mxu0 0
        %580 = vmatprep.subr.bf16.mxu0 0
        %581 = vmatpush1.bf16.msra.mxu0 0
        %582 = vmatprep.subr.bf16.mxu0 0
        %583 = vmatpush1.bf16.msra.mxu0 0
        %584 = vmatprep.subr.bf16.mxu0 0
        %585 = vmatpush1.bf16.msra.mxu0 0
        %586 = vmatprep.subr.bf16.mxu0 0
        %587 = vmatpush1.bf16.msra.mxu0 0
        %588 = vmatprep.subr.bf16.mxu0 0
        %589 = vmatpush1.bf16.msra.mxu0 0
        %590 = vmatprep.subr.bf16.mxu0 0
        %591 = vmatpush1.bf16.msra.mxu0 0
        %592 = vmatprep.subr.bf16.mxu0 0
        %593 = vmatpush1.bf16.msra.mxu0 0
        %594 = vmatprep.subr.bf16.mxu0 0
        %595 = vmatpush1.bf16.msra.mxu0 0
        %596 = vmatprep.subr.bf16.mxu0 0
        %597 = vmatpush1.bf16.msra.mxu0 0
        %598 = vmatprep.subr.bf16.mxu0 0
        %599 = vmatpush1.bf16.msra.mxu0 0
        %600 = vmatprep.subr.bf16.mxu0 0
        %601 = vmatpush1.bf16.msra.mxu0 0
        %602 = vmatprep.mubr.bf16.mxu0 0
        %603 = vmatmul.mubr.bf16.gmra.mrb[0].mxu0 %v568
        %v604 = vpop.f32.mrb[0].mxu0
        %v605 = vadd.f32 %v553, %v604
        %v606 = vpop.f32.mrb[0].mxu0
        %v607 = vpop.f32.mrb[0].mxu0
        %v608 = vpop.f32.mrb[0].mxu0
        %609 = vdwg.mxu0
        %v610 = vld [vmem:[#allocation10] sm:$0xf]
        %v611 = vld [vmem:[#allocation10 + $0x4] sm:$0xf]
        %v612 = vld [vmem:[#allocation10 + $0x8] sm:$0xf]
        %v613 = vld [vmem:[#allocation10 + $0xc] sm:$0xf]
        %v614 = vld [vmem:[%s8] sm:$0x1]
        %v616 = vlaneseq
        %v617 = vshrl.u32 %v616, 7
        %v618 = vsub.s32 0, %v617
        %v619 = vrot.slane %v614, %v618
        %v625 = vunpack.c.l.b16 %v610
        %v626 = vunpack.c.l.b16 %v611
        %v627 = vunpack.c.l.b16 %v612
        %v628 = vunpack.c.l.b16 %v613
        %v629 = vpack.c.b16 %v626, %v625
        %v630 = vpack.c.b16 %v628, %v627
        %633 = vmatprep.subr.bf16.mxu0 0
        %634 = vmatpush1.bf16.msra.mxu0 %v629
        %635 = vmatprep.subr.bf16.mxu0 0
        %636 = vmatpush1.bf16.msra.mxu0 %v630
        %637 = vmatprep.subr.bf16.mxu0 0
        %638 = vmatpush1.bf16.msra.mxu0 0
        %639 = vmatprep.subr.bf16.mxu0 0
        %640 = vmatpush1.bf16.msra.mxu0 0
        %641 = vmatprep.subr.bf16.mxu0 0
        %642 = vmatpush1.bf16.msra.mxu0 0
        %643 = vmatprep.subr.bf16.mxu0 0
        %644 = vmatpush1.bf16.msra.mxu0 0
        %645 = vmatprep.subr.bf16.mxu0 0
        %646 = vmatpush1.bf16.msra.mxu0 0
        %647 = vmatprep.subr.bf16.mxu0 0
        %648 = vmatpush1.bf16.msra.mxu0 0
        %649 = vmatprep.subr.bf16.mxu0 0
        %650 = vmatpush1.bf16.msra.mxu0 0
        %651 = vmatprep.subr.bf16.mxu0 0
        %652 = vmatpush1.bf16.msra.mxu0 0
        %653 = vmatprep.subr.bf16.mxu0 0
        %654 = vmatpush1.bf16.msra.mxu0 0
        %655 = vmatprep.subr.bf16.mxu0 0
        %656 = vmatpush1.bf16.msra.mxu0 0
        %657 = vmatprep.subr.bf16.mxu0 0
        %658 = vmatpush1.bf16.msra.mxu0 0
        %659 = vmatprep.subr.bf16.mxu0 0
        %660 = vmatpush1.bf16.msra.mxu0 0
        %661 = vmatprep.subr.bf16.mxu0 0
        %662 = vmatpush1.bf16.msra.mxu0 0
        %663 = vmatprep.subr.bf16.mxu0 0
        %664 = vmatpush1.bf16.msra.mxu0 0
        %665 = vmatprep.mubr.bf16.mxu0 0
        %666 = vmatmul.mubr.bf16.gmra.mrb[0].mxu0 %v568
        %v667 = vpop.f32.mrb[0].mxu0
        %v668 = vadd.f32 %v619, %v667
        %v669 = vpop.f32.mrb[0].mxu0
        %v670 = vpop.f32.mrb[0].mxu0
        %v671 = vpop.f32.mrb[0].mxu0
        %672 = vdwg.mxu0
        %674 = vrot.lane.b32.xlu0 %v539, 120
        %v675 = vpop.permute.xlu0 %674
        %677 = vrot.lane.b32.xlu0 %v539, 112
        %v678 = vpop.permute.xlu0 %677
        %680 = vrot.lane.b32.xlu0 %v539, 104
        %v681 = vpop.permute.xlu0 %680
        %v683 = vcombine.low %v539, %v678
        %v684 = vcombine.high %v539, %v678
        %v686 = vunpack.c.l.s4 1983009808
        %v687 = vunpack.c.0.s8 %v686
        %v688 = vlaneseq
        %v689 = vshrl.u32 %v688, 7
        %v690 = vsub.s32 %v687, %v689
        %v691 = vrot.slane %v683, %v690
        %v693 = vunpack.c.l.s4 1983009808
        %v694 = vunpack.c.0.s8 %v693
        %v695 = vlaneseq
        %v696 = vshrl.u32 %v695, 7
        %v697 = vsub.s32 %v694, %v696
        %v698 = vrot.slane %v684, %v697
        %v699 = vcombine.low %v675, %v681
        %v700 = vcombine.high %v675, %v681
        %v702 = vunpack.c.l.s4 1983009808
        %v703 = vunpack.c.0.s8 %v702
        %v704 = vlaneseq
        %v705 = vshrl.u32 %v704, 7
        %v706 = vsub.s32 %v703, %v705
        %v707 = vrot.slane %v699, %v706
        %v709 = vunpack.c.l.s4 1983009808
        %v710 = vunpack.c.0.s8 %v709
        %v711 = vlaneseq
        %v712 = vshrl.u32 %v711, 7
        %v713 = vsub.s32 %v710, %v712
        %v714 = vrot.slane %v700, %v713
        %v715 = vcombine.low %v691, %v707
        %v716 = vcombine.high %v691, %v707
        %v718 = vunpack.c.l.s4 1934713408
        %v719 = vunpack.c.0.s8 %v718
        %v720 = vlaneseq
        %v721 = vshrl.u32 %v720, 7
        %v722 = vsub.s32 %v719, %v721
        %v723 = vrot.slane %v715, %v722
        %v725 = vunpack.c.l.s4 1934713408
        %v726 = vunpack.c.0.s8 %v725
        %v727 = vlaneseq
        %v728 = vshrl.u32 %v727, 7
        %v729 = vsub.s32 %v726, %v728
        %v730 = vrot.slane %v716, %v729
        %v731 = vcombine.low %v698, %v714
        %v732 = vcombine.high %v698, %v714
        %v734 = vunpack.c.l.s4 1934713408
        %v735 = vunpack.c.0.s8 %v734
        %v736 = vlaneseq
        %v737 = vshrl.u32 %v736, 7
        %v738 = vsub.s32 %v735, %v737
        %v739 = vrot.slane %v731, %v738
        %v741 = vunpack.c.l.s4 1934713408
        %v742 = vunpack.c.0.s8 %v741
        %v743 = vlaneseq
        %v744 = vshrl.u32 %v743, 7
        %v745 = vsub.s32 %v742, %v744
        %v746 = vrot.slane %v732, %v745
        %v747 = vcombine.high %v723, 0.0
        %v748 = vcombine.high %v730, 0.0
        %v749 = vcombine.high %v739, 0.0
        %v750 = vcombine.high %v746, 0.0
        %v751 = vcombine.low %v723, %v730
        %v753 = vunpack.c.l.s4 1983009808
        %v754 = vunpack.c.0.s8 %v753
        %v755 = vlaneseq
        %v756 = vshrl.u32 %v755, 7
        %v757 = vsub.s32 %v754, %v756
        %v758 = vrot.slane %v751, %v757
        %v759 = vcombine.low %v747, %v748
        %v761 = vunpack.c.l.s4 1983009808
        %v762 = vunpack.c.0.s8 %v761
        %v763 = vlaneseq
        %v764 = vshrl.u32 %v763, 7
        %v765 = vsub.s32 %v762, %v764
        %v766 = vrot.slane %v759, %v765
        %v767 = vcombine.low %v739, %v746
        %v769 = vunpack.c.l.s4 1983009808
        %v770 = vunpack.c.0.s8 %v769
        %v771 = vlaneseq
        %v772 = vshrl.u32 %v771, 7
        %v773 = vsub.s32 %v770, %v772
        %v774 = vrot.slane %v767, %v773
        %v775 = vcombine.low %v749, %v750
        %v777 = vunpack.c.l.s4 1983009808
        %v778 = vunpack.c.0.s8 %v777
        %v779 = vlaneseq
        %v780 = vshrl.u32 %v779, 7
        %v781 = vsub.s32 %v778, %v780
        %v782 = vrot.slane %v775, %v781
        %v783 = vcombine.low %v758, %v766
        %v784 = vcombine.high %v758, %v766
        %v786 = vunpack.c.l.s4 1934713408
        %v787 = vunpack.c.0.s8 %v786
        %v788 = vlaneseq
        %v789 = vshrl.u32 %v788, 7
        %v790 = vsub.s32 %v787, %v789
        %v791 = vrot.slane %v783, %v790
        %v793 = vunpack.c.l.s4 1934713408
        %v794 = vunpack.c.0.s8 %v793
        %v795 = vlaneseq
        %v796 = vshrl.u32 %v795, 7
        %v797 = vsub.s32 %v794, %v796
        %v798 = vrot.slane %v784, %v797
        %v799 = vcombine.low %v774, %v782
        %v800 = vcombine.high %v774, %v782
        %v802 = vunpack.c.l.s4 1934713408
        %v803 = vunpack.c.0.s8 %v802
        %v804 = vlaneseq
        %v805 = vshrl.u32 %v804, 7
        %v806 = vsub.s32 %v803, %v805
        %v807 = vrot.slane %v799, %v806
        %v809 = vunpack.c.l.s4 1934713408
        %v810 = vunpack.c.0.s8 %v809
        %v811 = vlaneseq
        %v812 = vshrl.u32 %v811, 7
        %v813 = vsub.s32 %v810, %v812
        %v814 = vrot.slane %v800, %v813
        %v815 = vcombine.low %v791, %v807
        %v816 = vcombine.high %v791, %v807
        %v817 = vcombine.low %v798, %v814
        %v818 = vcombine.high %v798, %v814
        %v819 = vpack.c.bf16 %v815, %v815
        %v820 = vpack.c.bf16 %v816, %v816
        %v821 = vpack.c.bf16 %v817, %v817
        %v822 = vpack.c.bf16 %v818, %v818
        %824 = vrot.lane.b32.xlu0 %v605, 120
        %v825 = vpop.permute.xlu0 %824
        %827 = vrot.lane.b32.xlu0 %v605, 112
        %v828 = vpop.permute.xlu0 %827
        %830 = vrot.lane.b32.xlu0 %v605, 104
        %v831 = vpop.permute.xlu0 %830
        %v833 = vcombine.low %v605, %v828
        %v834 = vcombine.high %v605, %v828
        %v836 = vunpack.c.l.s4 1983009808
        %v837 = vunpack.c.0.s8 %v836
        %v838 = vlaneseq
        %v839 = vshrl.u32 %v838, 7
        %v840 = vsub.s32 %v837, %v839
        %v841 = vrot.slane %v833, %v840
        %v843 = vunpack.c.l.s4 1983009808
        %v844 = vunpack.c.0.s8 %v843
        %v845 = vlaneseq
        %v846 = vshrl.u32 %v845, 7
        %v847 = vsub.s32 %v844, %v846
        %v848 = vrot.slane %v834, %v847
        %v849 = vcombine.low %v825, %v831
        %v850 = vcombine.high %v825, %v831
        %v852 = vunpack.c.l.s4 1983009808
        %v853 = vunpack.c.0.s8 %v852
        %v854 = vlaneseq
        %v855 = vshrl.u32 %v854, 7
        %v856 = vsub.s32 %v853, %v855
        %v857 = vrot.slane %v849, %v856
        %v859 = vunpack.c.l.s4 1983009808
        %v860 = vunpack.c.0.s8 %v859
        %v861 = vlaneseq
        %v862 = vshrl.u32 %v861, 7
        %v863 = vsub.s32 %v860, %v862
        %v864 = vrot.slane %v850, %v863
        %v865 = vcombine.low %v841, %v857
        %v866 = vcombine.high %v841, %v857
        %v868 = vunpack.c.l.s4 1934713408
        %v869 = vunpack.c.0.s8 %v868
        %v870 = vlaneseq
        %v871 = vshrl.u32 %v870, 7
        %v872 = vsub.s32 %v869, %v871
        %v873 = vrot.slane %v865, %v872
        %v875 = vunpack.c.l.s4 1934713408
        %v876 = vunpack.c.0.s8 %v875
        %v877 = vlaneseq
        %v878 = vshrl.u32 %v877, 7
        %v879 = vsub.s32 %v876, %v878
        %v880 = vrot.slane %v866, %v879
        %v881 = vcombine.low %v848, %v864
        %v882 = vcombine.high %v848, %v864
        %v884 = vunpack.c.l.s4 1934713408
        %v885 = vunpack.c.0.s8 %v884
        %v886 = vlaneseq
        %v887 = vshrl.u32 %v886, 7
        %v888 = vsub.s32 %v885, %v887
        %v889 = vrot.slane %v881, %v888
        %v891 = vunpack.c.l.s4 1934713408
        %v892 = vunpack.c.0.s8 %v891
        %v893 = vlaneseq
        %v894 = vshrl.u32 %v893, 7
        %v895 = vsub.s32 %v892, %v894
        %v896 = vrot.slane %v882, %v895
        %v897 = vcombine.high %v873, 0.0
        %v898 = vcombine.high %v880, 0.0
        %v899 = vcombine.high %v889, 0.0
        %v900 = vcombine.high %v896, 0.0
        %v901 = vcombine.low %v873, %v880
        %v903 = vunpack.c.l.s4 1983009808
        %v904 = vunpack.c.0.s8 %v903
        %v905 = vlaneseq
        %v906 = vshrl.u32 %v905, 7
        %v907 = vsub.s32 %v904, %v906
        %v908 = vrot.slane %v901, %v907
        %v909 = vcombine.low %v897, %v898
        %v911 = vunpack.c.l.s4 1983009808
        %v912 = vunpack.c.0.s8 %v911
        %v913 = vlaneseq
        %v914 = vshrl.u32 %v913, 7
        %v915 = vsub.s32 %v912, %v914
        %v916 = vrot.slane %v909, %v915
        %v917 = vcombine.low %v889, %v896
        %v919 = vunpack.c.l.s4 1983009808
        %v920 = vunpack.c.0.s8 %v919
        %v921 = vlaneseq
        %v922 = vshrl.u32 %v921, 7
        %v923 = vsub.s32 %v920, %v922
        %v924 = vrot.slane %v917, %v923
        %v925 = vcombine.low %v899, %v900
        %v927 = vunpack.c.l.s4 1983009808
        %v928 = vunpack.c.0.s8 %v927
        %v929 = vlaneseq
        %v930 = vshrl.u32 %v929, 7
        %v931 = vsub.s32 %v928, %v930
        %v932 = vrot.slane %v925, %v931
        %v933 = vcombine.low %v908, %v916
        %v934 = vcombine.high %v908, %v916
        %v936 = vunpack.c.l.s4 1934713408
        %v937 = vunpack.c.0.s8 %v936
        %v938 = vlaneseq
        %v939 = vshrl.u32 %v938, 7
        %v940 = vsub.s32 %v937, %v939
        %v941 = vrot.slane %v933, %v940
        %v943 = vunpack.c.l.s4 1934713408
        %v944 = vunpack.c.0.s8 %v943
        %v945 = vlaneseq
        %v946 = vshrl.u32 %v945, 7
        %v947 = vsub.s32 %v944, %v946
        %v948 = vrot.slane %v934, %v947
        %v949 = vcombine.low %v924, %v932
        %v950 = vcombine.high %v924, %v932
        %v952 = vunpack.c.l.s4 1934713408
        %v953 = vunpack.c.0.s8 %v952
        %v954 = vlaneseq
        %v955 = vshrl.u32 %v954, 7
        %v956 = vsub.s32 %v953, %v955
        %v957 = vrot.slane %v949, %v956
        %v959 = vunpack.c.l.s4 1934713408
        %v960 = vunpack.c.0.s8 %v959
        %v961 = vlaneseq
        %v962 = vshrl.u32 %v961, 7
        %v963 = vsub.s32 %v960, %v962
        %v964 = vrot.slane %v950, %v963
        %v965 = vcombine.low %v941, %v957
        %v966 = vcombine.high %v941, %v957
        %v967 = vcombine.low %v948, %v964
        %v968 = vcombine.high %v948, %v964
        %v969 = vpack.c.bf16 %v965, %v965
        %v970 = vpack.c.bf16 %v966, %v966
        %v971 = vpack.c.bf16 %v967, %v967
        %v972 = vpack.c.bf16 %v968, %v968
        %974 = vrot.lane.b32.xlu0 %v668, 120
        %v975 = vpop.permute.xlu0 %974
        %977 = vrot.lane.b32.xlu0 %v668, 112
        %v978 = vpop.permute.xlu0 %977
        %980 = vrot.lane.b32.xlu0 %v668, 104
        %v981 = vpop.permute.xlu0 %980
        %v983 = vcombine.low %v668, %v978
        %v984 = vcombine.high %v668, %v978
        %v986 = vunpack.c.l.s4 1983009808
        %v987 = vunpack.c.0.s8 %v986
        %v988 = vlaneseq
        %v989 = vshrl.u32 %v988, 7
        %v990 = vsub.s32 %v987, %v989
        %v991 = vrot.slane %v983, %v990
        %v993 = vunpack.c.l.s4 1983009808
        %v994 = vunpack.c.0.s8 %v993
        %v995 = vlaneseq
        %v996 = vshrl.u32 %v995, 7
        %v997 = vsub.s32 %v994, %v996
        %v998 = vrot.slane %v984, %v997
        %v999 = vcombine.low %v975, %v981
        %v1000 = vcombine.high %v975, %v981
        %v1002 = vunpack.c.l.s4 1983009808
        %v1003 = vunpack.c.0.s8 %v1002
        %v1004 = vlaneseq
        %v1005 = vshrl.u32 %v1004, 7
        %v1006 = vsub.s32 %v1003, %v1005
        %v1007 = vrot.slane %v999, %v1006
        %v1009 = vunpack.c.l.s4 1983009808
        %v1010 = vunpack.c.0.s8 %v1009
        %v1011 = vlaneseq
        %v1012 = vshrl.u32 %v1011, 7
        %v1013 = vsub.s32 %v1010, %v1012
        %v1014 = vrot.slane %v1000, %v1013
        %v1015 = vcombine.low %v991, %v1007
        %v1016 = vcombine.high %v991, %v1007
        %v1018 = vunpack.c.l.s4 1934713408
        %v1019 = vunpack.c.0.s8 %v1018
        %v1020 = vlaneseq
        %v1021 = vshrl.u32 %v1020, 7
        %v1022 = vsub.s32 %v1019, %v1021
        %v1023 = vrot.slane %v1015, %v1022
        %v1025 = vunpack.c.l.s4 1934713408
        %v1026 = vunpack.c.0.s8 %v1025
        %v1027 = vlaneseq
        %v1028 = vshrl.u32 %v1027, 7
        %v1029 = vsub.s32 %v1026, %v1028
        %v1030 = vrot.slane %v1016, %v1029
        %v1031 = vcombine.low %v998, %v1014
        %v1032 = vcombine.high %v998, %v1014
        %v1034 = vunpack.c.l.s4 1934713408
        %v1035 = vunpack.c.0.s8 %v1034
        %v1036 = vlaneseq
        %v1037 = vshrl.u32 %v1036, 7
        %v1038 = vsub.s32 %v1035, %v1037
        %v1039 = vrot.slane %v1031, %v1038
        %v1041 = vunpack.c.l.s4 1934713408
        %v1042 = vunpack.c.0.s8 %v1041
        %v1043 = vlaneseq
        %v1044 = vshrl.u32 %v1043, 7
        %v1045 = vsub.s32 %v1042, %v1044
        %v1046 = vrot.slane %v1032, %v1045
        %v1047 = vcombine.high %v1023, 0.0
        %v1048 = vcombine.high %v1030, 0.0
        %v1049 = vcombine.high %v1039, 0.0
        %v1050 = vcombine.high %v1046, 0.0
        %v1051 = vcombine.low %v1023, %v1030
        %v1053 = vunpack.c.l.s4 1983009808
        %v1054 = vunpack.c.0.s8 %v1053
        %v1055 = vlaneseq
        %v1056 = vshrl.u32 %v1055, 7
        %v1057 = vsub.s32 %v1054, %v1056
        %v1058 = vrot.slane %v1051, %v1057
        %v1059 = vcombine.low %v1047, %v1048
        %v1061 = vunpack.c.l.s4 1983009808
        %v1062 = vunpack.c.0.s8 %v1061
        %v1063 = vlaneseq
        %v1064 = vshrl.u32 %v1063, 7
        %v1065 = vsub.s32 %v1062, %v1064
        %v1066 = vrot.slane %v1059, %v1065
        %v1067 = vcombine.low %v1039, %v1046
        %v1069 = vunpack.c.l.s4 1983009808
        %v1070 = vunpack.c.0.s8 %v1069
        %v1071 = vlaneseq
        %v1072 = vshrl.u32 %v1071, 7
        %v1073 = vsub.s32 %v1070, %v1072
        %v1074 = vrot.slane %v1067, %v1073
        %v1075 = vcombine.low %v1049, %v1050
        %v1077 = vunpack.c.l.s4 1983009808
        %v1078 = vunpack.c.0.s8 %v1077
        %v1079 = vlaneseq
        %v1080 = vshrl.u32 %v1079, 7
        %v1081 = vsub.s32 %v1078, %v1080
        %v1082 = vrot.slane %v1075, %v1081
        %v1083 = vcombine.low %v1058, %v1066
        %v1084 = vcombine.high %v1058, %v1066
        %v1086 = vunpack.c.l.s4 1934713408
        %v1087 = vunpack.c.0.s8 %v1086
        %v1088 = vlaneseq
        %v1089 = vshrl.u32 %v1088, 7
        %v1090 = vsub.s32 %v1087, %v1089
        %v1091 = vrot.slane %v1083, %v1090
        %v1093 = vunpack.c.l.s4 1934713408
        %v1094 = vunpack.c.0.s8 %v1093
        %v1095 = vlaneseq
        %v1096 = vshrl.u32 %v1095, 7
        %v1097 = vsub.s32 %v1094, %v1096
        %v1098 = vrot.slane %v1084, %v1097
        %v1099 = vcombine.low %v1074, %v1082
        %v1100 = vcombine.high %v1074, %v1082
        %v1102 = vunpack.c.l.s4 1934713408
        %v1103 = vunpack.c.0.s8 %v1102
        %v1104 = vlaneseq
        %v1105 = vshrl.u32 %v1104, 7
        %v1106 = vsub.s32 %v1103, %v1105
        %v1107 = vrot.slane %v1099, %v1106
        %v1109 = vunpack.c.l.s4 1934713408
        %v1110 = vunpack.c.0.s8 %v1109
        %v1111 = vlaneseq
        %v1112 = vshrl.u32 %v1111, 7
        %v1113 = vsub.s32 %v1110, %v1112
        %v1114 = vrot.slane %v1100, %v1113
        %v1115 = vcombine.low %v1091, %v1107
        %v1116 = vcombine.high %v1091, %v1107
        %v1117 = vcombine.low %v1098, %v1114
        %v1118 = vcombine.high %v1098, %v1114
        %v1119 = vpack.c.bf16 %v1115, %v1115
        %v1120 = vpack.c.bf16 %v1116, %v1116
        %v1121 = vpack.c.bf16 %v1117, %v1117
        %v1122 = vpack.c.bf16 %v1118, %v1118
        %vm1123 = vcmask 64512
        %v1125 = vsel %vm1123, %v819, 0
        %v1128 = vsel %vm1123, %v969, 0
        %1130 = vmatprep.subr.bf16.mxu0 0
        %1131 = vmatpush1.bf16.xpose.msra.mxu0 %v1128
        %1132 = vmatprep.subr.bf16.mxu0 0
        %1133 = vmatpush1.bf16.xpose.msra.mxu0 0
        %1134 = vmatprep.subr.bf16.mxu0 0
        %1135 = vmatpush1.bf16.xpose.msra.mxu0 0
        %1136 = vmatprep.subr.bf16.mxu0 0
        %1137 = vmatpush1.bf16.xpose.msra.mxu0 0
        %1138 = vmatprep.subr.bf16.mxu0 0
        %1139 = vmatpush1.bf16.xpose.msra.mxu0 0
        %1140 = vmatprep.subr.bf16.mxu0 0
        %1141 = vmatpush1.bf16.xpose.msra.mxu0 0
        %1142 = vmatprep.subr.bf16.mxu0 0
        %1143 = vmatpush1.bf16.xpose.msra.mxu0 0
        %1144 = vmatprep.subr.bf16.mxu0 0
        %1145 = vmatpush1.bf16.xpose.msra.mxu0 0
        %1146 = vmatprep.subr.bf16.mxu0 0
        %1147 = vmatpush1.bf16.xpose.msra.mxu0 0
        %1148 = vmatprep.subr.bf16.mxu0 0
        %1149 = vmatpush1.bf16.xpose.msra.mxu0 0
        %1150 = vmatprep.subr.bf16.mxu0 0
        %1151 = vmatpush1.bf16.xpose.msra.mxu0 0
        %1152 = vmatprep.subr.bf16.mxu0 0
        %1153 = vmatpush1.bf16.xpose.msra.mxu0 0
        %1154 = vmatprep.subr.bf16.mxu0 0
        %1155 = vmatpush1.bf16.xpose.msra.mxu0 0
        %1156 = vmatprep.subr.bf16.mxu0 0
        %1157 = vmatpush1.bf16.xpose.msra.mxu0 0
        %1158 = vmatprep.subr.bf16.mxu0 0
        %1159 = vmatpush1.bf16.xpose.msra.mxu0 0
        %1160 = vmatprep.subr.bf16.mxu0 0
        %1161 = vmatpush1.bf16.xpose.msra.mxu0 0
        %1162 = vmatprep.mubr.bf16.mxu0 0
        %1163 = vmatmul.mubr.bf16.gmra.mrb[0].mxu0 %v1125
        %v1164 = vpop.f32.mrb[0].mxu0
        %v1165 = vadd.f32 0.0, %v1164
        %v1166 = vpop.f32.mrb[0].mxu0
        %v1167 = vpop.f32.mrb[0].mxu0
        %v1168 = vpop.f32.mrb[0].mxu0
        %1169 = vdwg.mxu0
        %v1171 = vsel %vm1123, %v820, 0
        %v1174 = vsel %vm1123, %v970, 0
        %1176 = vmatprep.subr.bf16.mxu0 0
        %1177 = vmatpush1.bf16.xpose.msra.mxu0 %v1174
        %1178 = vmatprep.subr.bf16.mxu0 0
        %1179 = vmatpush1.bf16.xpose.msra.mxu0 0
        %1180 = vmatprep.subr.bf16.mxu0 0
        %1181 = vmatpush1.bf16.xpose.msra.mxu0 0
        %1182 = vmatprep.subr.bf16.mxu0 0
        %1183 = vmatpush1.bf16.xpose.msra.mxu0 0
        %1184 = vmatprep.subr.bf16.mxu0 0
        %1185 = vmatpush1.bf16.xpose.msra.mxu0 0
        %1186 = vmatprep.subr.bf16.mxu0 0
        %1187 = vmatpush1.bf16.xpose.msra.mxu0 0
        %1188 = vmatprep.subr.bf16.mxu0 0
        %1189 = vmatpush1.bf16.xpose.msra.mxu0 0
        %1190 = vmatprep.subr.bf16.mxu0 0
        %1191 = vmatpush1.bf16.xpose.msra.mxu0 0
        %1192 = vmatprep.subr.bf16.mxu0 0
        %1193 = vmatpush1.bf16.xpose.msra.mxu0 0
        %1194 = vmatprep.subr.bf16.mxu0 0
        %1195 = vmatpush1.bf16.xpose.msra.mxu0 0
        %1196 = vmatprep.subr.bf16.mxu0 0
        %1197 = vmatpush1.bf16.xpose.msra.mxu0 0
        %1198 = vmatprep.subr.bf16.mxu0 0
        %1199 = vmatpush1.bf16.xpose.msra.mxu0 0
        %1200 = vmatprep.subr.bf16.mxu0 0
        %1201 = vmatpush1.bf16.xpose.msra.mxu0 0
        %1202 = vmatprep.subr.bf16.mxu0 0
        %1203 = vmatpush1.bf16.xpose.msra.mxu0 0
        %1204 = vmatprep.subr.bf16.mxu0 0
        %1205 = vmatpush1.bf16.xpose.msra.mxu0 0
        %1206 = vmatprep.subr.bf16.mxu0 0
        %1207 = vmatpush1.bf16.xpose.msra.mxu0 0
        %1208 = vmatprep.mubr.bf16.mxu0 0
        %1209 = vmatmul.mubr.bf16.gmra.mrb[0].mxu0 %v1171
        %v1210 = vpop.f32.mrb[0].mxu0
        %v1211 = vadd.f32 0.0, %v1210
        %v1212 = vpop.f32.mrb[0].mxu0
        %v1213 = vpop.f32.mrb[0].mxu0
        %v1214 = vpop.f32.mrb[0].mxu0
        %1215 = vdwg.mxu0
        %v1217 = vsel %vm1123, %v821, 0
        %v1220 = vsel %vm1123, %v971, 0
        %1222 = vmatprep.subr.bf16.mxu0 0
        %1223 = vmatpush1.bf16.xpose.msra.mxu0 %v1220
        %1224 = vmatprep.subr.bf16.mxu0 0
        %1225 = vmatpush1.bf16.xpose.msra.mxu0 0
        %1226 = vmatprep.subr.bf16.mxu0 0
        %1227 = vmatpush1.bf16.xpose.msra.mxu0 0
        %1228 = vmatprep.subr.bf16.mxu0 0
        %1229 = vmatpush1.bf16.xpose.msra.mxu0 0
        %1230 = vmatprep.subr.bf16.mxu0 0
        %1231 = vmatpush1.bf16.xpose.msra.mxu0 0
        %1232 = vmatprep.subr.bf16.mxu0 0
        %1233 = vmatpush1.bf16.xpose.msra.mxu0 0
        %1234 = vmatprep.subr.bf16.mxu0 0
        %1235 = vmatpush1.bf16.xpose.msra.mxu0 0
        %1236 = vmatprep.subr.bf16.mxu0 0
        %1237 = vmatpush1.bf16.xpose.msra.mxu0 0
        %1238 = vmatprep.subr.bf16.mxu0 0
        %1239 = vmatpush1.bf16.xpose.msra.mxu0 0
        %1240 = vmatprep.subr.bf16.mxu0 0
        %1241 = vmatpush1.bf16.xpose.msra.mxu0 0
        %1242 = vmatprep.subr.bf16.mxu0 0
        %1243 = vmatpush1.bf16.xpose.msra.mxu0 0
        %1244 = vmatprep.subr.bf16.mxu0 0
        %1245 = vmatpush1.bf16.xpose.msra.mxu0 0
        %1246 = vmatprep.subr.bf16.mxu0 0
        %1247 = vmatpush1.bf16.xpose.msra.mxu0 0
        %1248 = vmatprep.subr.bf16.mxu0 0
        %1249 = vmatpush1.bf16.xpose.msra.mxu0 0
        %1250 = vmatprep.subr.bf16.mxu0 0
        %1251 = vmatpush1.bf16.xpose.msra.mxu0 0
        %1252 = vmatprep.subr.bf16.mxu0 0
        %1253 = vmatpush1.bf16.xpose.msra.mxu0 0
        %1254 = vmatprep.mubr.bf16.mxu0 0
        %1255 = vmatmul.mubr.bf16.gmra.mrb[0].mxu0 %v1217
        %v1256 = vpop.f32.mrb[0].mxu0
        %v1257 = vadd.f32 0.0, %v1256
        %v1258 = vpop.f32.mrb[0].mxu0
        %v1259 = vpop.f32.mrb[0].mxu0
        %v1260 = vpop.f32.mrb[0].mxu0
        %1261 = vdwg.mxu0
        %v1263 = vsel %vm1123, %v822, 0
        %v1266 = vsel %vm1123, %v972, 0
        %1268 = vmatprep.subr.bf16.mxu0 0
        %1269 = vmatpush1.bf16.xpose.msra.mxu0 %v1266
        %1270 = vmatprep.subr.bf16.mxu0 0
        %1271 = vmatpush1.bf16.xpose.msra.mxu0 0
        %1272 = vmatprep.subr.bf16.mxu0 0
        %1273 = vmatpush1.bf16.xpose.msra.mxu0 0
        %1274 = vmatprep.subr.bf16.mxu0 0
        %1275 = vmatpush1.bf16.xpose.msra.mxu0 0
        %1276 = vmatprep.subr.bf16.mxu0 0
        %1277 = vmatpush1.bf16.xpose.msra.mxu0 0
        %1278 = vmatprep.subr.bf16.mxu0 0
        %1279 = vmatpush1.bf16.xpose.msra.mxu0 0
        %1280 = vmatprep.subr.bf16.mxu0 0
        %1281 = vmatpush1.bf16.xpose.msra.mxu0 0
        %1282 = vmatprep.subr.bf16.mxu0 0
        %1283 = vmatpush1.bf16.xpose.msra.mxu0 0
        %1284 = vmatprep.subr.bf16.mxu0 0
        %1285 = vmatpush1.bf16.xpose.msra.mxu0 0
        %1286 = vmatprep.subr.bf16.mxu0 0
        %1287 = vmatpush1.bf16.xpose.msra.mxu0 0
        %1288 = vmatprep.subr.bf16.mxu0 0
        %1289 = vmatpush1.bf16.xpose.msra.mxu0 0
        %1290 = vmatprep.subr.bf16.mxu0 0
        %1291 = vmatpush1.bf16.xpose.msra.mxu0 0
        %1292 = vmatprep.subr.bf16.mxu0 0
        %1293 = vmatpush1.bf16.xpose.msra.mxu0 0
        %1294 = vmatprep.subr.bf16.mxu0 0
        %1295 = vmatpush1.bf16.xpose.msra.mxu0 0
        %1296 = vmatprep.subr.bf16.mxu0 0
        %1297 = vmatpush1.bf16.xpose.msra.mxu0 0
        %1298 = vmatprep.subr.bf16.mxu0 0
        %1299 = vmatpush1.bf16.xpose.msra.mxu0 0
        %1300 = vmatprep.mubr.bf16.mxu0 0
        %1301 = vmatmul.mubr.bf16.gmra.mrb[0].mxu0 %v1263
        %v1302 = vpop.f32.mrb[0].mxu0
        %v1303 = vadd.f32 0.0, %v1302
        %v1304 = vpop.f32.mrb[0].mxu0
        %v1305 = vpop.f32.mrb[0].mxu0
        %v1306 = vpop.f32.mrb[0].mxu0
        %1307 = vdwg.mxu0
        %v1308 = vsel %vm1123, %v1165, -inf
        %1309 = vmax.xlane.f32.xlu0 %v1308
        %v1310 = vpop.xlane.xlu0 %1309
        %v1311 = vsel %vm1123, %v1211, -inf
        %1312 = vmax.xlane.f32.xlu0 %v1311
        %v1313 = vpop.xlane.xlu0 %1312
        %v1314 = vsel %vm1123, %v1257, -inf
        %1315 = vmax.xlane.f32.xlu0 %v1314
        %v1316 = vpop.xlane.xlu0 %1315
        %v1317 = vsel %vm1123, %v1303, -inf
        %1318 = vmax.xlane.f32.xlu0 %v1317
        %v1319 = vpop.xlane.xlu0 %1318
        %v1320 = vsub.f32 %v1165, %v1310
        %v1321 = vsub.f32 %v1211, %v1313
        %v1322 = vsub.f32 %v1257, %v1316
        %v1323 = vsub.f32 %v1303, %v1319
        %v1324 = vmul.f32 %v1320, 1.442695
        %v1325 = vpow.pop %v1324
        %v1326 = vmul.f32 %v1321, 1.442695
        %v1327 = vpow.pop %v1326
        %v1328 = vmul.f32 %v1322, 1.442695
        %v1329 = vpow.pop %v1328
        %v1330 = vmul.f32 %v1323, 1.442695
        %v1331 = vpow.pop %v1330
        %v1332 = vsel %vm1123, %v1325, 0.0
        %1333 = vadd.xlane.f32.xlu0 %v1332
        %v1334 = vpop.xlane.xlu0 %1333
        %v1335 = vsel %vm1123, %v1327, 0.0
        %1336 = vadd.xlane.f32.xlu0 %v1335
        %v1337 = vpop.xlane.xlu0 %1336
        %v1338 = vsel %vm1123, %v1329, 0.0
        %1339 = vadd.xlane.f32.xlu0 %v1338
        %v1340 = vpop.xlane.xlu0 %1339
        %v1341 = vsel %vm1123, %v1331, 0.0
        %1342 = vadd.xlane.f32.xlu0 %v1341
        %v1343 = vpop.xlane.xlu0 %1342
        %v1344 = vpack.c.bf16 %v1325, %v1325
        %v1345 = vpack.c.bf16 %v1327, %v1327
        %v1346 = vpack.c.bf16 %v1329, %v1329
        %v1347 = vpack.c.bf16 %v1331, %v1331
        %v1349 = vsel %vm1123, %v1344, 0
        %vm1351 = vcmask 1043456
        %v1353 = vsel %vm1351, %v1119, 0
        %1355 = vmatprep.subr.bf16.mxu0 0
        %1356 = vmatpush1.bf16.msra.mxu0 %v1353
        %1357 = vmatprep.subr.bf16.mxu0 0
        %1358 = vmatpush1.bf16.msra.mxu0 0
        %1359 = vmatprep.subr.bf16.mxu0 0
        %1360 = vmatpush1.bf16.msra.mxu0 0
        %1361 = vmatprep.subr.bf16.mxu0 0
        %1362 = vmatpush1.bf16.msra.mxu0 0
        %1363 = vmatprep.subr.bf16.mxu0 0
        %1364 = vmatpush1.bf16.msra.mxu0 0
        %1365 = vmatprep.subr.bf16.mxu0 0
        %1366 = vmatpush1.bf16.msra.mxu0 0
        %1367 = vmatprep.subr.bf16.mxu0 0
        %1368 = vmatpush1.bf16.msra.mxu0 0
        %1369 = vmatprep.subr.bf16.mxu0 0
        %1370 = vmatpush1.bf16.msra.mxu0 0
        %1371 = vmatprep.subr.bf16.mxu0 0
        %1372 = vmatpush1.bf16.msra.mxu0 0
        %1373 = vmatprep.subr.bf16.mxu0 0
        %1374 = vmatpush1.bf16.msra.mxu0 0
        %1375 = vmatprep.subr.bf16.mxu0 0
        %1376 = vmatpush1.bf16.msra.mxu0 0
        %1377 = vmatprep.subr.bf16.mxu0 0
        %1378 = vmatpush1.bf16.msra.mxu0 0
        %1379 = vmatprep.subr.bf16.mxu0 0
        %1380 = vmatpush1.bf16.msra.mxu0 0
        %1381 = vmatprep.subr.bf16.mxu0 0
        %1382 = vmatpush1.bf16.msra.mxu0 0
        %1383 = vmatprep.subr.bf16.mxu0 0
        %1384 = vmatpush1.bf16.msra.mxu0 0
        %1385 = vmatprep.subr.bf16.mxu0 0
        %1386 = vmatpush1.bf16.msra.mxu0 0
        %1387 = vmatprep.mubr.bf16.mxu0 0
        %1388 = vmatmul.mubr.bf16.gmra.mrb[0].mxu0 %v1349
        %v1389 = vpop.f32.mrb[0].mxu0
        %v1390 = vadd.f32 0.0, %v1389
        %v1391 = vpop.f32.mrb[0].mxu0
        %v1392 = vpop.f32.mrb[0].mxu0
        %v1393 = vpop.f32.mrb[0].mxu0
        %1394 = vdwg.mxu0
        %v1396 = vsel %vm1123, %v1345, 0
        %v1399 = vsel %vm1351, %v1120, 0
        %1401 = vmatprep.subr.bf16.mxu0 0
        %1402 = vmatpush1.bf16.msra.mxu0 %v1399
        %1403 = vmatprep.subr.bf16.mxu0 0
        %1404 = vmatpush1.bf16.msra.mxu0 0
        %1405 = vmatprep.subr.bf16.mxu0 0
        %1406 = vmatpush1.bf16.msra.mxu0 0
        %1407 = vmatprep.subr.bf16.mxu0 0
        %1408 = vmatpush1.bf16.msra.mxu0 0
        %1409 = vmatprep.subr.bf16.mxu0 0
        %1410 = vmatpush1.bf16.msra.mxu0 0
        %1411 = vmatprep.subr.bf16.mxu0 0
        %1412 = vmatpush1.bf16.msra.mxu0 0
        %1413 = vmatprep.subr.bf16.mxu0 0
        %1414 = vmatpush1.bf16.msra.mxu0 0
        %1415 = vmatprep.subr.bf16.mxu0 0
        %1416 = vmatpush1.bf16.msra.mxu0 0
        %1417 = vmatprep.subr.bf16.mxu0 0
        %1418 = vmatpush1.bf16.msra.mxu0 0
        %1419 = vmatprep.subr.bf16.mxu0 0
        %1420 = vmatpush1.bf16.msra.mxu0 0
        %1421 = vmatprep.subr.bf16.mxu0 0
        %1422 = vmatpush1.bf16.msra.mxu0 0
        %1423 = vmatprep.subr.bf16.mxu0 0
        %1424 = vmatpush1.bf16.msra.mxu0 0
        %1425 = vmatprep.subr.bf16.mxu0 0
        %1426 = vmatpush1.bf16.msra.mxu0 0
        %1427 = vmatprep.subr.bf16.mxu0 0
        %1428 = vmatpush1.bf16.msra.mxu0 0
        %1429 = vmatprep.subr.bf16.mxu0 0
        %1430 = vmatpush1.bf16.msra.mxu0 0
        %1431 = vmatprep.subr.bf16.mxu0 0
        %1432 = vmatpush1.bf16.msra.mxu0 0
        %1433 = vmatprep.mubr.bf16.mxu0 0
        %1434 = vmatmul.mubr.bf16.gmra.mrb[0].mxu0 %v1396
        %v1435 = vpop.f32.mrb[0].mxu0
        %v1436 = vadd.f32 0.0, %v1435
        %v1437 = vpop.f32.mrb[0].mxu0
        %v1438 = vpop.f32.mrb[0].mxu0
        %v1439 = vpop.f32.mrb[0].mxu0
        %1440 = vdwg.mxu0
        %v1442 = vsel %vm1123, %v1346, 0
        %v1445 = vsel %vm1351, %v1121, 0
        %1447 = vmatprep.subr.bf16.mxu0 0
        %1448 = vmatpush1.bf16.msra.mxu0 %v1445
        %1449 = vmatprep.subr.bf16.mxu0 0
        %1450 = vmatpush1.bf16.msra.mxu0 0
        %1451 = vmatprep.subr.bf16.mxu0 0
        %1452 = vmatpush1.bf16.msra.mxu0 0
        %1453 = vmatprep.subr.bf16.mxu0 0
        %1454 = vmatpush1.bf16.msra.mxu0 0
        %1455 = vmatprep.subr.bf16.mxu0 0
        %1456 = vmatpush1.bf16.msra.mxu0 0
        %1457 = vmatprep.subr.bf16.mxu0 0
        %1458 = vmatpush1.bf16.msra.mxu0 0
        %1459 = vmatprep.subr.bf16.mxu0 0
        %1460 = vmatpush1.bf16.msra.mxu0 0
        %1461 = vmatprep.subr.bf16.mxu0 0
        %1462 = vmatpush1.bf16.msra.mxu0 0
        %1463 = vmatprep.subr.bf16.mxu0 0
        %1464 = vmatpush1.bf16.msra.mxu0 0
        %1465 = vmatprep.subr.bf16.mxu0 0
        %1466 = vmatpush1.bf16.msra.mxu0 0
        %1467 = vmatprep.subr.bf16.mxu0 0
        %1468 = vmatpush1.bf16.msra.mxu0 0
        %1469 = vmatprep.subr.bf16.mxu0 0
        %1470 = vmatpush1.bf16.msra.mxu0 0
        %1471 = vmatprep.subr.bf16.mxu0 0
        %1472 = vmatpush1.bf16.msra.mxu0 0
        %1473 = vmatprep.subr.bf16.mxu0 0
        %1474 = vmatpush1.bf16.msra.mxu0 0
        %1475 = vmatprep.subr.bf16.mxu0 0
        %1476 = vmatpush1.bf16.msra.mxu0 0
        %1477 = vmatprep.subr.bf16.mxu0 0
        %1478 = vmatpush1.bf16.msra.mxu0 0
        %1479 = vmatprep.mubr.bf16.mxu0 0
        %1480 = vmatmul.mubr.bf16.gmra.mrb[0].mxu0 %v1442
        %v1481 = vpop.f32.mrb[0].mxu0
        %v1482 = vadd.f32 0.0, %v1481
        %v1483 = vpop.f32.mrb[0].mxu0
        %v1484 = vpop.f32.mrb[0].mxu0
        %v1485 = vpop.f32.mrb[0].mxu0
        %1486 = vdwg.mxu0
        %v1488 = vsel %vm1123, %v1347, 0
        %v1491 = vsel %vm1351, %v1122, 0
        %1493 = vmatprep.subr.bf16.mxu0 0
        %1494 = vmatpush1.bf16.msra.mxu0 %v1491
        %1495 = vmatprep.subr.bf16.mxu0 0
        %1496 = vmatpush1.bf16.msra.mxu0 0
        %1497 = vmatprep.subr.bf16.mxu0 0
        %1498 = vmatpush1.bf16.msra.mxu0 0
        %1499 = vmatprep.subr.bf16.mxu0 0
        %1500 = vmatpush1.bf16.msra.mxu0 0
        %1501 = vmatprep.subr.bf16.mxu0 0
        %1502 = vmatpush1.bf16.msra.mxu0 0
        %1503 = vmatprep.subr.bf16.mxu0 0
        %1504 = vmatpush1.bf16.msra.mxu0 0
        %1505 = vmatprep.subr.bf16.mxu0 0
        %1506 = vmatpush1.bf16.msra.mxu0 0
        %1507 = vmatprep.subr.bf16.mxu0 0
        %1508 = vmatpush1.bf16.msra.mxu0 0
        %1509 = vmatprep.subr.bf16.mxu0 0
        %1510 = vmatpush1.bf16.msra.mxu0 0
        %1511 = vmatprep.subr.bf16.mxu0 0
        %1512 = vmatpush1.bf16.msra.mxu0 0
        %1513 = vmatprep.subr.bf16.mxu0 0
        %1514 = vmatpush1.bf16.msra.mxu0 0
        %1515 = vmatprep.subr.bf16.mxu0 0
        %1516 = vmatpush1.bf16.msra.mxu0 0
        %1517 = vmatprep.subr.bf16.mxu0 0
        %1518 = vmatpush1.bf16.msra.mxu0 0
        %1519 = vmatprep.subr.bf16.mxu0 0
        %1520 = vmatpush1.bf16.msra.mxu0 0
        %1521 = vmatprep.subr.bf16.mxu0 0
        %1522 = vmatpush1.bf16.msra.mxu0 0
        %1523 = vmatprep.subr.bf16.mxu0 0
        %1524 = vmatpush1.bf16.msra.mxu0 0
        %1525 = vmatprep.mubr.bf16.mxu0 0
        %1526 = vmatmul.mubr.bf16.gmra.mrb[0].mxu0 %v1488
        %v1527 = vpop.f32.mrb[0].mxu0
        %v1528 = vadd.f32 0.0, %v1527
        %v1529 = vpop.f32.mrb[0].mxu0
        %v1530 = vpop.f32.mrb[0].mxu0
        %v1531 = vpop.f32.mrb[0].mxu0
        %1532 = vdwg.mxu0
        %v1533 = vrcp.pop %v1334
        %v1534 = vrcp.pop %v1337
        %v1535 = vrcp.pop %v1340
        %v1536 = vrcp.pop %v1343
        %v1537 = vmul.f32 %v1390, %v1533
        %v1538 = vmul.f32 %v1436, %v1534
        %v1539 = vmul.f32 %v1482, %v1535
        %v1540 = vmul.f32 %v1528, %v1536
        %v1541 = vpack.c.bf16 %v1537, %v1537
        %v1542 = vpack.c.bf16 %v1538, %v1538
        %v1543 = vpack.c.bf16 %v1539, %v1539
        %v1544 = vpack.c.bf16 %v1540, %v1540
        %v1545 = vld [vmem:[%s5] sm:$0xf]
        %v1546 = vld [vmem:[%s5 + $0x4] sm:$0xf]
        %v1547 = vld [vmem:[%s5 + $0x8] sm:$0xf]
        %v1548 = vld [vmem:[%s5 + $0xc] sm:$0xf]
        %v1550 = vsel %vm1123, %v1541, 0
        %v1553 = vsel %vm1351, %v1545, 0
        %1555 = vmatprep.subr.bf16.mxu0 0
        %1556 = vmatpush1.bf16.msra.mxu0 %v1553
        %1557 = vmatprep.subr.bf16.mxu0 0
        %1558 = vmatpush1.bf16.msra.mxu0 0
        %1559 = vmatprep.subr.bf16.mxu0 0
        %1560 = vmatpush1.bf16.msra.mxu0 0
        %1561 = vmatprep.subr.bf16.mxu0 0
        %1562 = vmatpush1.bf16.msra.mxu0 0
        %1563 = vmatprep.subr.bf16.mxu0 0
        %1564 = vmatpush1.bf16.msra.mxu0 0
        %1565 = vmatprep.subr.bf16.mxu0 0
        %1566 = vmatpush1.bf16.msra.mxu0 0
        %1567 = vmatprep.subr.bf16.mxu0 0
        %1568 = vmatpush1.bf16.msra.mxu0 0
        %1569 = vmatprep.subr.bf16.mxu0 0
        %1570 = vmatpush1.bf16.msra.mxu0 0
        %1571 = vmatprep.subr.bf16.mxu0 0
        %1572 = vmatpush1.bf16.msra.mxu0 0
        %1573 = vmatprep.subr.bf16.mxu0 0
        %1574 = vmatpush1.bf16.msra.mxu0 0
        %1575 = vmatprep.subr.bf16.mxu0 0
        %1576 = vmatpush1.bf16.msra.mxu0 0
        %1577 = vmatprep.subr.bf16.mxu0 0
        %1578 = vmatpush1.bf16.msra.mxu0 0
        %1579 = vmatprep.subr.bf16.mxu0 0
        %1580 = vmatpush1.bf16.msra.mxu0 0
        %1581 = vmatprep.subr.bf16.mxu0 0
        %1582 = vmatpush1.bf16.msra.mxu0 0
        %1583 = vmatprep.subr.bf16.mxu0 0
        %1584 = vmatpush1.bf16.msra.mxu0 0
        %1585 = vmatprep.subr.bf16.mxu0 0
        %1586 = vmatpush1.bf16.msra.mxu0 0
        %1587 = vmatprep.mubr.bf16.mxu0 0
        %1588 = vmatmul.mubr.bf16.gmra.mrb[0].mxu0 %v1550
        %v1589 = vpop.f32.mrb[0].mxu0
        %v1590 = vadd.f32 0.0, %v1589
        %v1591 = vpop.f32.mrb[0].mxu0
        %v1592 = vpop.f32.mrb[0].mxu0
        %v1593 = vpop.f32.mrb[0].mxu0
        %1594 = vdwg.mxu0
        %v1596 = vsel %vm1123, %v1542, 0
        %v1599 = vsel %vm1351, %v1546, 0
        %1601 = vmatprep.subr.bf16.mxu0 0
        %1602 = vmatpush1.bf16.msra.mxu0 %v1599
        %1603 = vmatprep.subr.bf16.mxu0 0
        %1604 = vmatpush1.bf16.msra.mxu0 0
        %1605 = vmatprep.subr.bf16.mxu0 0
        %1606 = vmatpush1.bf16.msra.mxu0 0
        %1607 = vmatprep.subr.bf16.mxu0 0
        %1608 = vmatpush1.bf16.msra.mxu0 0
        %1609 = vmatprep.subr.bf16.mxu0 0
        %1610 = vmatpush1.bf16.msra.mxu0 0
        %1611 = vmatprep.subr.bf16.mxu0 0
        %1612 = vmatpush1.bf16.msra.mxu0 0
        %1613 = vmatprep.subr.bf16.mxu0 0
        %1614 = vmatpush1.bf16.msra.mxu0 0
        %1615 = vmatprep.subr.bf16.mxu0 0
        %1616 = vmatpush1.bf16.msra.mxu0 0
        %1617 = vmatprep.subr.bf16.mxu0 0
        %1618 = vmatpush1.bf16.msra.mxu0 0
        %1619 = vmatprep.subr.bf16.mxu0 0
        %1620 = vmatpush1.bf16.msra.mxu0 0
        %1621 = vmatprep.subr.bf16.mxu0 0
        %1622 = vmatpush1.bf16.msra.mxu0 0
        %1623 = vmatprep.subr.bf16.mxu0 0
        %1624 = vmatpush1.bf16.msra.mxu0 0
        %1625 = vmatprep.subr.bf16.mxu0 0
        %1626 = vmatpush1.bf16.msra.mxu0 0
        %1627 = vmatprep.subr.bf16.mxu0 0
        %1628 = vmatpush1.bf16.msra.mxu0 0
        %1629 = vmatprep.subr.bf16.mxu0 0
        %1630 = vmatpush1.bf16.msra.mxu0 0
        %1631 = vmatprep.subr.bf16.mxu0 0
        %1632 = vmatpush1.bf16.msra.mxu0 0
        %1633 = vmatprep.mubr.bf16.mxu0 0
        %1634 = vmatmul.mubr.bf16.gmra.mrb[0].mxu0 %v1596
        %v1635 = vpop.f32.mrb[0].mxu0
        %v1636 = vadd.f32 0.0, %v1635
        %v1637 = vpop.f32.mrb[0].mxu0
        %v1638 = vpop.f32.mrb[0].mxu0
        %v1639 = vpop.f32.mrb[0].mxu0
        %1640 = vdwg.mxu0
        %v1642 = vsel %vm1123, %v1543, 0
        %v1645 = vsel %vm1351, %v1547, 0
        %1647 = vmatprep.subr.bf16.mxu0 0
        %1648 = vmatpush1.bf16.msra.mxu0 %v1645
        %1649 = vmatprep.subr.bf16.mxu0 0
        %1650 = vmatpush1.bf16.msra.mxu0 0
        %1651 = vmatprep.subr.bf16.mxu0 0
        %1652 = vmatpush1.bf16.msra.mxu0 0
        %1653 = vmatprep.subr.bf16.mxu0 0
        %1654 = vmatpush1.bf16.msra.mxu0 0
        %1655 = vmatprep.subr.bf16.mxu0 0
        %1656 = vmatpush1.bf16.msra.mxu0 0
        %1657 = vmatprep.subr.bf16.mxu0 0
        %1658 = vmatpush1.bf16.msra.mxu0 0
        %1659 = vmatprep.subr.bf16.mxu0 0
        %1660 = vmatpush1.bf16.msra.mxu0 0
        %1661 = vmatprep.subr.bf16.mxu0 0
        %1662 = vmatpush1.bf16.msra.mxu0 0
        %1663 = vmatprep.subr.bf16.mxu0 0
        %1664 = vmatpush1.bf16.msra.mxu0 0
        %1665 = vmatprep.subr.bf16.mxu0 0
        %1666 = vmatpush1.bf16.msra.mxu0 0
        %1667 = vmatprep.subr.bf16.mxu0 0
        %1668 = vmatpush1.bf16.msra.mxu0 0
        %1669 = vmatprep.subr.bf16.mxu0 0
        %1670 = vmatpush1.bf16.msra.mxu0 0
        %1671 = vmatprep.subr.bf16.mxu0 0
        %1672 = vmatpush1.bf16.msra.mxu0 0
        %1673 = vmatprep.subr.bf16.mxu0 0
        %1674 = vmatpush1.bf16.msra.mxu0 0
        %1675 = vmatprep.subr.bf16.mxu0 0
        %1676 = vmatpush1.bf16.msra.mxu0 0
        %1677 = vmatprep.subr.bf16.mxu0 0
        %1678 = vmatpush1.bf16.msra.mxu0 0
        %1679 = vmatprep.mubr.bf16.mxu0 0
        %1680 = vmatmul.mubr.bf16.gmra.mrb[0].mxu0 %v1642
        %v1681 = vpop.f32.mrb[0].mxu0
        %v1682 = vadd.f32 0.0, %v1681
        %v1683 = vpop.f32.mrb[0].mxu0
        %v1684 = vpop.f32.mrb[0].mxu0
        %v1685 = vpop.f32.mrb[0].mxu0
        %1686 = vdwg.mxu0
        %v1688 = vsel %vm1123, %v1544, 0
        %v1691 = vsel %vm1351, %v1548, 0
        %1693 = vmatprep.subr.bf16.mxu0 0
        %1694 = vmatpush1.bf16.msra.mxu0 %v1691
        %1695 = vmatprep.subr.bf16.mxu0 0
        %1696 = vmatpush1.bf16.msra.mxu0 0
        %1697 = vmatprep.subr.bf16.mxu0 0
        %1698 = vmatpush1.bf16.msra.mxu0 0
        %1699 = vmatprep.subr.bf16.mxu0 0
        %1700 = vmatpush1.bf16.msra.mxu0 0
        %1701 = vmatprep.subr.bf16.mxu0 0
        %1702 = vmatpush1.bf16.msra.mxu0 0
        %1703 = vmatprep.subr.bf16.mxu0 0
        %1704 = vmatpush1.bf16.msra.mxu0 0
        %1705 = vmatprep.subr.bf16.mxu0 0
        %1706 = vmatpush1.bf16.msra.mxu0 0
        %1707 = vmatprep.subr.bf16.mxu0 0
        %1708 = vmatpush1.bf16.msra.mxu0 0
        %1709 = vmatprep.subr.bf16.mxu0 0
        %1710 = vmatpush1.bf16.msra.mxu0 0
        %1711 = vmatprep.subr.bf16.mxu0 0
        %1712 = vmatpush1.bf16.msra.mxu0 0
        %1713 = vmatprep.subr.bf16.mxu0 0
        %1714 = vmatpush1.bf16.msra.mxu0 0
        %1715 = vmatprep.subr.bf16.mxu0 0
        %1716 = vmatpush1.bf16.msra.mxu0 0
        %1717 = vmatprep.subr.bf16.mxu0 0
        %1718 = vmatpush1.bf16.msra.mxu0 0
        %1719 = vmatprep.subr.bf16.mxu0 0
        %1720 = vmatpush1.bf16.msra.mxu0 0
        %1721 = vmatprep.subr.bf16.mxu0 0
        %1722 = vmatpush1.bf16.msra.mxu0 0
        %1723 = vmatprep.subr.bf16.mxu0 0
        %1724 = vmatpush1.bf16.msra.mxu0 0
        %1725 = vmatprep.mubr.bf16.mxu0 0
        %1726 = vmatmul.mubr.bf16.gmra.mrb[0].mxu0 %v1688
        %v1727 = vpop.f32.mrb[0].mxu0
        %v1728 = vadd.f32 0.0, %v1727
        %v1729 = vpop.f32.mrb[0].mxu0
        %v1730 = vpop.f32.mrb[0].mxu0
        %v1731 = vpop.f32.mrb[0].mxu0
        %1732 = vdwg.mxu0
        %v1733 = vsel %vm500, %v1590, 0.0
        %v1734 = vsel %vm500, %v1636, 0.0
        %v1735 = vadd.f32 %v1733, %v1734
        %v1736 = vsel %vm500, %v1682, 0.0
        %v1737 = vadd.f32 %v1735, %v1736
        %v1738 = vsel %vm500, %v1728, 0.0
        %v1739 = vadd.f32 %v1737, %v1738
        %v1740 = vld [vmem:[%s9] sm:$0x1]
        %v1742 = vlaneseq
        %v1743 = vshrl.u32 %v1742, 7
        %v1744 = vsub.s32 0, %v1743
        %v1745 = vrot.slane %v1740, %v1744
        %v1747 = vadd.f32 %v1739, %v1745
        %1748 = vst.msk [vmem:[%s471] sm:$0xff] %vm500, %v1747
        %s1749 = sand.u32 %s275, 1
        %s1750 = scalar_lea.sflag [#allocation4], %s1749
        %s1751 = sand.u32 %s275, 1
        %s1752 = smul.addr %s1751, 8
        %s1753 = scalar_lea.vmem [#allocation11], %s1752
        // Predicated region
        $region81: #{tpu_custom_call.1} parent=59 // pred_check
          %p1754 = pneg %p285
        $region82: #{tpu_custom_call.1} parent=59 // pred_check_branch
          %1756 = sbr.rel (%p1754) target = $region84
        $region83: #{tpu_custom_call.1} parent=59 // pred_region
          %s1758 = ssub.s32 128, 128
          %1759 = vsyncadd %s1750, %s1758
          %s1760 = sadd.s32 %s36, %s35
          %s1761 = smul.addr %s1760, 128
          %s1762 = scalar_lea.hbm %s10, %s1761
          %s1764 = sshll.u32 %s1753, 4
          %s1765 = int_to_ptr.vmem [resolvable:$true] %s1764
          %1767 = dma.vmem_to_hbm [thread:$0]  %s1765, 128, %s1762, %s1750
        $region84: #{tpu_custom_call.1} parent=59 // pred_fallthru
          _
      $region60: #{tpu_custom_call.1} parent=5 // pred_fallthru
        _
      %p1768 = scmp.le.s32.totalorder 2, %s26
      // Predicated region
      $region85: #{tpu_custom_call.1} parent=5 // pred_check
        %p1769 = pneg %p1768
      $region86: #{tpu_custom_call.1} parent=5 // pred_check_branch
        %1771 = sbr.rel (%p1769) target = $region88
      $region87: #{tpu_custom_call.1} parent=5 // pred_region
        %s1772 = ssub.s32 %s26, 2
        // Predicated region
        $region89: #{tpu_custom_call.1} parent=87 // pred_check
          %p1773 = pneg %p291
        $region90: #{tpu_custom_call.1} parent=87 // pred_check_branch
          %1775 = sbr.rel (%p1773) target = $region92
        $region91: #{tpu_custom_call.1} parent=87 // pred_region
          %s1776 = sand.u32 %s276, 1
          %s1777 = scalar_lea.sflag [#allocation4], %s1776
          %s1778 = sand.u32 %s276, 1
          %s1779 = smul.addr %s1778, 8
          %s1780 = scalar_lea.vmem [#allocation11], %s1779
          %1781 = dma.done %s1777, 128
        $region92: #{tpu_custom_call.1} parent=87 // pred_fallthru
          _
      $region88: #{tpu_custom_call.1} parent=5 // pred_fallthru
        _
    $region6: #{tpu_custom_call.1} parent=1 // loop_footer
      %s30 = sadd.s32 1, %s26
    $region7: #{tpu_custom_call.1} parent=1 // loop_footer_branch
      %25 = sbr.rel target = $region3
    $region8: #{tpu_custom_call.1} parent=1 // loop_exit
      _
    %1782 = vsyncpa [#allocation3], 1
    %s1783 = scalar_lea.sflag [#allocation3], 1
    %1784 = vsyncpa %s1783, 1
    %1785 = vsyncpa [#allocation6], 1
    %s1786 = scalar_lea.sflag [#allocation6], 1
    %1787 = vsyncpa %s1786, 1
    %1788 = vsyncpa [#allocation9], 1
    %1789 = vsyncpa [#allocation4], 1
    %s1790 = scalar_lea.sflag [#allocation4], 1
    %1791 = vsyncpa %s1790, 1

</llo_original>
